<compile_context>
chip_gen: v7x
topology: tpu7x:2x2x1
jax: 0.10.0
libtpu: 0.0.40
codegen_flags: <defaults>
</compile_context>

<pallas_src>
import jax
import jax.numpy as jnp
from jax.experimental import pallas as pl
from jax.experimental.pallas import tpu as pltpu  # noqa: F401 (kept for parity)

_OUT_LANES = 128  # lane-dense padding for the tiny (5-wide) classification head


def _full_spec(shape):
    """BlockSpec covering the whole array (single invocation, empty grid)."""
    nd = len(shape)
    return pl.BlockSpec(shape, lambda *args, _nd=nd: (0,) * _nd)


def _make_rnn_kernel(T, B, H, L, V):
    """Kernel body for static (T, B, H, L, V)."""

    def kernel(tok_ref, embf_ref, whh0_ref, b0_ref, *refs):
        # refs = [W_ih_1, W_hh_1, b_1, ..., W_ih_{L-1}, W_hh_{L-1}, b_{L-1},
        #         w_fc, b_fc, out]
        n_upper = 3 * (L - 1)
        wih_refs = [refs[3 * i] for i in range(L - 1)]
        whh_refs = [refs[3 * i + 1] for i in range(L - 1)]
        b_refs = [refs[3 * i + 2] for i in range(L - 1)]
        w_fc_ref = refs[n_upper]
        b_fc_ref = refs[n_upper + 1]
        out_ref = refs[n_upper + 2]

        # --- Hoist all weight/bias loads out of the unrolled recurrence. ---
        whh0 = whh0_ref[...]                                          # (H, H)
        wihs = [r[...] for r in wih_refs]                             # (H, H) each
        whhs = [r[...] for r in whh_refs]                             # (H, H) each
        bbs = [jnp.broadcast_to(r[...], (B, H)) for r in b_refs]      # (B, H) each
        w_fc = w_fc_ref[...]                                          # (H, 128)
        b_fc = b_fc_ref[...]                                          # (1, 128)

        # --- Embedding gather + layer-0 input projection + bias: ONE matmul,
        #     entirely off the recurrence critical path. ---
        tok = tok_ref[...]                                            # (T*B, 1) int32
        vocab_iota = jax.lax.broadcasted_iota(jnp.int32, (T * B, V), 1)
        onehot = (vocab_iota == tok).astype(jnp.float32)              # (T*B, V)
        x_proj0 = (jnp.dot(onehot, embf_ref[...],
                           preferred_element_type=jnp.float32)        # (T*B, H)
                   + jnp.broadcast_to(b0_ref[...], (T * B, H)))

        # --- Recurrence: hidden state carried in registers, fully unrolled.
        #     Layer 0: tanh(x_proj0[t] + h0 @ W_hh0)
        #     Layer l>=1: tanh(inp @ W_ih_l + h_l @ W_hh_l + b_l)  (no concat) ---
        h = [jnp.zeros((B, H), jnp.float32) for _ in range(L)]
        inp = h[0]
        for t in range(T):                               # static unroll over time
            h0_new = jnp.tanh(
                x_proj0[t * B:(t + 1) * B, :]
                + jnp.dot(h[0], whh0, preferred_element_type=jnp.float32))
            h[0] = h0_new
            inp = h0_new
            for l in range(1, L):                        # static unroll over layers
                h_new = jnp.tanh(
                    jnp.dot(inp, wihs[l - 1], preferred_element_type=jnp.float32)
                    + jnp.dot(h[l], whhs[l - 1], preferred_element_type=jnp.float32)
                    + bbs[l - 1])
                h[l] = h_new
                inp = h_new

        # --- Final Linear on the last timestep's top-layer hidden state. ---
        out_ref[...] = (
            jnp.dot(inp, w_fc, preferred_element_type=jnp.float32) + b_fc)

    return kernel


def rnn_forward(x_tokens, params):
    """Forward pass matching the PyTorch RNN module.

    x_tokens: (T, B) int32 token ids
    returns:  (B, 5) float32 logits
    """
    emb_table = params["embedding"]              # (V, E)
    layers = params["layers"]
    w_fc, b_fc = params["w_fc"], params["b_fc"]  # (H, n_out), (1, n_out)

    T, B = x_tokens.shape
    V, E = emb_table.shape
    H = layers[0]["w_hh"].shape[0]
    L = len(layers)
    n_out = w_fc.shape[1]

    # Host-side parameter folding (pure precompute, no runtime cost):
    #   * embedding table fused with layer-0 input weight: (V, H)
    #   * combined bias per layer: b_ih + b_hh
    emb_fused = emb_table @ layers[0]["w_ih"]                     # (V, H)
    b0 = layers[0]["b_ih"] + layers[0]["b_hh"]                    # (1, H)
    whh0 = layers[0]["w_hh"]                                      # (H, H)
    upper = []
    for lyr in layers[1:]:
        upper.append(lyr["w_ih"])                                 # (H, H)
        upper.append(lyr["w_hh"])                                 # (H, H)
        upper.append(lyr["b_ih"] + lyr["b_hh"])                   # (1, H)

    # Lane-dense output head: zero-pad to 128 lanes, slice after the kernel.
    w_fc_pad = jnp.zeros((H, _OUT_LANES), jnp.float32).at[:, :n_out].set(w_fc)
    b_fc_pad = jnp.zeros((1, _OUT_LANES), jnp.float32).at[:, :n_out].set(b_fc)

    # Tokens flattened time-major so row t*B + b is (timestep t, batch b).
    tok_flat = x_tokens.reshape(T * B, 1).astype(jnp.int32)

    inputs = [tok_flat, emb_fused, whh0, b0] + upper + [w_fc_pad, b_fc_pad]
    in_specs = [_full_spec(a.shape) for a in inputs]

    kernel = _make_rnn_kernel(T=T, B=B, H=H, L=L, V=V)

    out_pad = pl.pallas_call(
        kernel,
        out_shape=jax.ShapeDtypeStruct((B, _OUT_LANES), jnp.float32),
        in_specs=in_specs,
        out_specs=_full_spec((B, _OUT_LANES)),
        # TODO(synk): at realistic batch sizes add a leading batch-tile grid
        # axis with dimension_semantics=("parallel",) (engages v7x's 2nd TC);
        # when H/V scale past the v7x 64 MiB VMEM budget, raise
        # vmem_limit_bytes or stream per-layer weights via a layer grid axis.
    )(*inputs)
    return out_pad[:, :n_out]


def init_params(key, input_size, embed_size, hidden_size, num_layers):
    """Deterministic parameter init with shapes matching the PyTorch module."""
    keys = jax.random.split(key, 3 + 4 * num_layers)
    k = iter(keys)
    params = {}
    params["embedding"] = jax.random.normal(
        next(k), (input_size, embed_size), jnp.float32)

    bound = 1.0 / jnp.sqrt(hidden_size).astype(jnp.float32)
    layers = []
    for l in range(num_layers):
        in_dim = embed_size if l == 0 else hidden_size
        layers.append({
            # stored pre-transposed so forward computes x @ W
            "w_ih": jax.random.uniform(next(k), (in_dim, hidden_size),
                                       jnp.float32, -bound, bound),
            "w_hh": jax.random.uniform(next(k), (hidden_size, hidden_size),
                                       jnp.float32, -bound, bound),
            "b_ih": jax.random.uniform(next(k), (1, hidden_size),
                                       jnp.float32, -bound, bound),
            "b_hh": jax.random.uniform(next(k), (1, hidden_size),
                                       jnp.float32, -bound, bound),
        })
    params["layers"] = layers

    fc_bound = 1.0 / jnp.sqrt(hidden_size).astype(jnp.float32)
    params["w_fc"] = jax.random.uniform(next(k), (hidden_size, 5),
                                        jnp.float32, -fc_bound, fc_bound)
    params["b_fc"] = jax.random.uniform(next(k), (1, 5),
                                        jnp.float32, -fc_bound, fc_bound)
    return params


def rnn_reference(x_tokens, params):
    """Pure-JAX reference of the same forward pass (silent correctness check)."""
    embedded = jnp.take(params["embedding"], x_tokens, axis=0)  # (T, B, E)
    L = len(params["layers"])
    B = x_tokens.shape[1]
    H = params["layers"][0]["w_hh"].shape[0]

    def step(h_all, x_t):
        inp = x_t
        new_h = []
        for l, lyr in enumerate(params["layers"]):
            h_new = jnp.tanh(inp @ lyr["w_ih"] + lyr["b_ih"]
                             + h_all[l] @ lyr["w_hh"] + lyr["b_hh"])
            new_h.append(h_new)
            inp = h_new
        return jnp.stack(new_h, 0), inp

    h0 = jnp.zeros((L, B, H), jnp.float32)
    _, outs = jax.lax.scan(step, h0, embedded)
    return outs[-1] @ params["w_fc"] + params["b_fc"]


if __name__ == "__main__":
    input_size = 50     # vocab size
    embed_size = 16
    hidden_size = 32
    num_layers = 2
    seq_len = 8
    batch = 2

    key = jax.random.PRNGKey(0)
    k_params, k_tokens = jax.random.split(key)
    params = init_params(k_params, input_size, embed_size, hidden_size, num_layers)

    x_tokens = jax.random.randint(k_tokens, (seq_len, batch), 0, input_size,
                                  dtype=jnp.int32)

    out = rnn_forward(x_tokens, params)
    out = jax.block_until_ready(out)
    assert out.shape == (batch, 5)

    ref = jax.block_until_ready(rnn_reference(x_tokens, params))
    assert jnp.allclose(out, ref, atol=1e-4, rtol=1e-4)

    print("KERNEL_OK")
</pallas_src>

<mosaic_0001>
module attributes {stable_mosaic.version = 11 : i64} {
  func.func @kernel(%arg0: memref<16x1xi32, #tpu.memory_space<vmem>>, %arg1: memref<50x32xf32, #tpu.memory_space<vmem>>, %arg2: memref<32x32xf32, #tpu.memory_space<vmem>>, %arg3: memref<1x32xf32, #tpu.memory_space<vmem>>, %arg4: memref<32x32xf32, #tpu.memory_space<vmem>>, %arg5: memref<32x32xf32, #tpu.memory_space<vmem>>, %arg6: memref<1x32xf32, #tpu.memory_space<vmem>>, %arg7: memref<32x128xf32, #tpu.memory_space<vmem>>, %arg8: memref<1x128xf32, #tpu.memory_space<vmem>>, %arg9: memref<2x128xf32, #tpu.memory_space<vmem>>) attributes {dimension_semantics = [], scalar_prefetch = 0 : i64, scratch_operands = 0 : i64, tpu.core_type = #tpu.core_type<tc>} {
    %c0 = arith.constant 0 : index
    %c0_0 = arith.constant 0 : index
    %0 = vector.load %arg2[%c0, %c0_0] : memref<32x32xf32, #tpu.memory_space<vmem>>, vector<32x32xf32>
    %c0_1 = arith.constant 0 : index
    %c0_2 = arith.constant 0 : index
    %1 = vector.load %arg4[%c0_1, %c0_2] : memref<32x32xf32, #tpu.memory_space<vmem>>, vector<32x32xf32>
    %c0_3 = arith.constant 0 : index
    %c0_4 = arith.constant 0 : index
    %2 = vector.load %arg5[%c0_3, %c0_4] : memref<32x32xf32, #tpu.memory_space<vmem>>, vector<32x32xf32>
    %c0_5 = arith.constant 0 : index
    %c0_6 = arith.constant 0 : index
    %3 = vector.load %arg6[%c0_5, %c0_6] : memref<1x32xf32, #tpu.memory_space<vmem>>, vector<1x32xf32>
    %4 = vector.shape_cast %3 : vector<1x32xf32> to vector<1x32xf32>
    %5 = vector.broadcast %4 : vector<1x32xf32> to vector<2x32xf32>
    %c0_7 = arith.constant 0 : index
    %c0_8 = arith.constant 0 : index
    %6 = vector.load %arg7[%c0_7, %c0_8] : memref<32x128xf32, #tpu.memory_space<vmem>>, vector<32x128xf32>
    %c0_9 = arith.constant 0 : index
    %c0_10 = arith.constant 0 : index
    %7 = vector.load %arg8[%c0_9, %c0_10] : memref<1x128xf32, #tpu.memory_space<vmem>>, vector<1x128xf32>
    %c0_11 = arith.constant 0 : index
    %c0_12 = arith.constant 0 : index
    %8 = vector.load %arg0[%c0_11, %c0_12] : memref<16x1xi32, #tpu.memory_space<vmem>>, vector<16x1xi32>
    %9 = tpu.iota {dimensions = array<i32: 1>} : vector<16x50xi32>
    %10 = vector.broadcast %8 : vector<16x1xi32> to vector<16x50xi32>
    %11 = arith.cmpi eq, %9, %10 : vector<16x50xi32>
    %12 = arith.extui %11 : vector<16x50xi1> to vector<16x50xi32>
    %13 = arith.sitofp %12 : vector<16x50xi32> to vector<16x50xf32>
    %c0_13 = arith.constant 0 : index
    %c0_14 = arith.constant 0 : index
    %14 = vector.load %arg1[%c0_13, %c0_14] : memref<50x32xf32, #tpu.memory_space<vmem>>, vector<50x32xf32>
    %cst = arith.constant dense<0.000000e+00> : vector<16x32xf32>
    %15 = tpu.matmul %13, %14, %cst {dimension_numbers = #tpu.dot_dimension_numbers<[1], [0], [0], [1], [0, 0, 1, 1], [], []>} : vector<16x50xf32>, vector<50x32xf32>, vector<16x32xf32> -> vector<16x32xf32>
    %c0_15 = arith.constant 0 : index
    %c0_16 = arith.constant 0 : index
    %16 = vector.load %arg3[%c0_15, %c0_16] : memref<1x32xf32, #tpu.memory_space<vmem>>, vector<1x32xf32>
    %17 = vector.shape_cast %16 : vector<1x32xf32> to vector<1x32xf32>
    %18 = vector.broadcast %17 : vector<1x32xf32> to vector<16x32xf32>
    %19 = arith.addf %15, %18 : vector<16x32xf32>
    %cst_17 = arith.constant 0.000000e+00 : f32
    %20 = vector.broadcast %cst_17 : f32 to vector<2x32xf32>
    %cst_18 = arith.constant 0.000000e+00 : f32
    %21 = vector.broadcast %cst_18 : f32 to vector<2x32xf32>
    %22 = vector.extract_strided_slice %19 {offsets = [0, 0], sizes = [2, 32], strides = [1, 1]} : vector<16x32xf32> to vector<2x32xf32>
    %cst_19 = arith.constant dense<0.000000e+00> : vector<2x32xf32>
    %23 = tpu.matmul %20, %0, %cst_19 {dimension_numbers = #tpu.dot_dimension_numbers<[1], [0], [0], [1], [0, 0, 1, 1], [], []>} : vector<2x32xf32>, vector<32x32xf32>, vector<2x32xf32> -> vector<2x32xf32>
    %24 = arith.addf %22, %23 : vector<2x32xf32>
    %25 = math.tanh %24 : vector<2x32xf32>
    %cst_20 = arith.constant dense<0.000000e+00> : vector<2x32xf32>
    %26 = tpu.matmul %25, %1, %cst_20 {dimension_numbers = #tpu.dot_dimension_numbers<[1], [0], [0], [1], [0, 0, 1, 1], [], []>} : vector<2x32xf32>, vector<32x32xf32>, vector<2x32xf32> -> vector<2x32xf32>
    %cst_21 = arith.constant dense<0.000000e+00> : vector<2x32xf32>
    %27 = tpu.matmul %21, %2, %cst_21 {dimension_numbers = #tpu.dot_dimension_numbers<[1], [0], [0], [1], [0, 0, 1, 1], [], []>} : vector<2x32xf32>, vector<32x32xf32>, vector<2x32xf32> -> vector<2x32xf32>
    %28 = arith.addf %26, %27 : vector<2x32xf32>
    %29 = arith.addf %28, %5 : vector<2x32xf32>
    %30 = math.tanh %29 : vector<2x32xf32>
    %31 = vector.extract_strided_slice %19 {offsets = [2, 0], sizes = [2, 32], strides = [1, 1]} : vector<16x32xf32> to vector<2x32xf32>
    %cst_22 = arith.constant dense<0.000000e+00> : vector<2x32xf32>
    %32 = tpu.matmul %25, %0, %cst_22 {dimension_numbers = #tpu.dot_dimension_numbers<[1], [0], [0], [1], [0, 0, 1, 1], [], []>} : vector<2x32xf32>, vector<32x32xf32>, vector<2x32xf32> -> vector<2x32xf32>
    %33 = arith.addf %31, %32 : vector<2x32xf32>
    %34 = math.tanh %33 : vector<2x32xf32>
    %cst_23 = arith.constant dense<0.000000e+00> : vector<2x32xf32>
    %35 = tpu.matmul %34, %1, %cst_23 {dimension_numbers = #tpu.dot_dimension_numbers<[1], [0], [0], [1], [0, 0, 1, 1], [], []>} : vector<2x32xf32>, vector<32x32xf32>, vector<2x32xf32> -> vector<2x32xf32>
    %cst_24 = arith.constant dense<0.000000e+00> : vector<2x32xf32>
    %36 = tpu.matmul %30, %2, %cst_24 {dimension_numbers = #tpu.dot_dimension_numbers<[1], [0], [0], [1], [0, 0, 1, 1], [], []>} : vector<2x32xf32>, vector<32x32xf32>, vector<2x32xf32> -> vector<2x32xf32>
    %37 = arith.addf %35, %36 : vector<2x32xf32>
    %38 = arith.addf %37, %5 : vector<2x32xf32>
    %39 = math.tanh %38 : vector<2x32xf32>
    %40 = vector.extract_strided_slice %19 {offsets = [4, 0], sizes = [2, 32], strides = [1, 1]} : vector<16x32xf32> to vector<2x32xf32>
    %cst_25 = arith.constant dense<0.000000e+00> : vector<2x32xf32>
    %41 = tpu.matmul %34, %0, %cst_25 {dimension_numbers = #tpu.dot_dimension_numbers<[1], [0], [0], [1], [0, 0, 1, 1], [], []>} : vector<2x32xf32>, vector<32x32xf32>, vector<2x32xf32> -> vector<2x32xf32>
    %42 = arith.addf %40, %41 : vector<2x32xf32>
    %43 = math.tanh %42 : vector<2x32xf32>
    %cst_26 = arith.constant dense<0.000000e+00> : vector<2x32xf32>
    %44 = tpu.matmul %43, %1, %cst_26 {dimension_numbers = #tpu.dot_dimension_numbers<[1], [0], [0], [1], [0, 0, 1, 1], [], []>} : vector<2x32xf32>, vector<32x32xf32>, vector<2x32xf32> -> vector<2x32xf32>
    %cst_27 = arith.constant dense<0.000000e+00> : vector<2x32xf32>
    %45 = tpu.matmul %39, %2, %cst_27 {dimension_numbers = #tpu.dot_dimension_numbers<[1], [0], [0], [1], [0, 0, 1, 1], [], []>} : vector<2x32xf32>, vector<32x32xf32>, vector<2x32xf32> -> vector<2x32xf32>
    %46 = arith.addf %44, %45 : vector<2x32xf32>
    %47 = arith.addf %46, %5 : vector<2x32xf32>
    %48 = math.tanh %47 : vector<2x32xf32>
    %49 = vector.extract_strided_slice %19 {offsets = [6, 0], sizes = [2, 32], strides = [1, 1]} : vector<16x32xf32> to vector<2x32xf32>
    %cst_28 = arith.constant dense<0.000000e+00> : vector<2x32xf32>
    %50 = tpu.matmul %43, %0, %cst_28 {dimension_numbers = #tpu.dot_dimension_numbers<[1], [0], [0], [1], [0, 0, 1, 1], [], []>} : vector<2x32xf32>, vector<32x32xf32>, vector<2x32xf32> -> vector<2x32xf32>
    %51 = arith.addf %49, %50 : vector<2x32xf32>
    %52 = math.tanh %51 : vector<2x32xf32>
    %cst_29 = arith.constant dense<0.000000e+00> : vector<2x32xf32>
    %53 = tpu.matmul %52, %1, %cst_29 {dimension_numbers = #tpu.dot_dimension_numbers<[1], [0], [0], [1], [0, 0, 1, 1], [], []>} : vector<2x32xf32>, vector<32x32xf32>, vector<2x32xf32> -> vector<2x32xf32>
    %cst_30 = arith.constant dense<0.000000e+00> : vector<2x32xf32>
    %54 = tpu.matmul %48, %2, %cst_30 {dimension_numbers = #tpu.dot_dimension_numbers<[1], [0], [0], [1], [0, 0, 1, 1], [], []>} : vector<2x32xf32>, vector<32x32xf32>, vector<2x32xf32> -> vector<2x32xf32>
    %55 = arith.addf %53, %54 : vector<2x32xf32>
    %56 = arith.addf %55, %5 : vector<2x32xf32>
    %57 = math.tanh %56 : vector<2x32xf32>
    %58 = vector.extract_strided_slice %19 {offsets = [8, 0], sizes = [2, 32], strides = [1, 1]} : vector<16x32xf32> to vector<2x32xf32>
    %cst_31 = arith.constant dense<0.000000e+00> : vector<2x32xf32>
    %59 = tpu.matmul %52, %0, %cst_31 {dimension_numbers = #tpu.dot_dimension_numbers<[1], [0], [0], [1], [0, 0, 1, 1], [], []>} : vector<2x32xf32>, vector<32x32xf32>, vector<2x32xf32> -> vector<2x32xf32>
    %60 = arith.addf %58, %59 : vector<2x32xf32>
    %61 = math.tanh %60 : vector<2x32xf32>
    %cst_32 = arith.constant dense<0.000000e+00> : vector<2x32xf32>
    %62 = tpu.matmul %61, %1, %cst_32 {dimension_numbers = #tpu.dot_dimension_numbers<[1], [0], [0], [1], [0, 0, 1, 1], [], []>} : vector<2x32xf32>, vector<32x32xf32>, vector<2x32xf32> -> vector<2x32xf32>
    %cst_33 = arith.constant dense<0.000000e+00> : vector<2x32xf32>
    %63 = tpu.matmul %57, %2, %cst_33 {dimension_numbers = #tpu.dot_dimension_numbers<[1], [0], [0], [1], [0, 0, 1, 1], [], []>} : vector<2x32xf32>, vector<32x32xf32>, vector<2x32xf32> -> vector<2x32xf32>
    %64 = arith.addf %62, %63 : vector<2x32xf32>
    %65 = arith.addf %64, %5 : vector<2x32xf32>
    %66 = math.tanh %65 : vector<2x32xf32>
    %67 = vector.extract_strided_slice %19 {offsets = [10, 0], sizes = [2, 32], strides = [1, 1]} : vector<16x32xf32> to vector<2x32xf32>
    %cst_34 = arith.constant dense<0.000000e+00> : vector<2x32xf32>
    %68 = tpu.matmul %61, %0, %cst_34 {dimension_numbers = #tpu.dot_dimension_numbers<[1], [0], [0], [1], [0, 0, 1, 1], [], []>} : vector<2x32xf32>, vector<32x32xf32>, vector<2x32xf32> -> vector<2x32xf32>
    %69 = arith.addf %67, %68 : vector<2x32xf32>
    %70 = math.tanh %69 : vector<2x32xf32>
    %cst_35 = arith.constant dense<0.000000e+00> : vector<2x32xf32>
    %71 = tpu.matmul %70, %1, %cst_35 {dimension_numbers = #tpu.dot_dimension_numbers<[1], [0], [0], [1], [0, 0, 1, 1], [], []>} : vector<2x32xf32>, vector<32x32xf32>, vector<2x32xf32> -> vector<2x32xf32>
    %cst_36 = arith.constant dense<0.000000e+00> : vector<2x32xf32>
    %72 = tpu.matmul %66, %2, %cst_36 {dimension_numbers = #tpu.dot_dimension_numbers<[1], [0], [0], [1], [0, 0, 1, 1], [], []>} : vector<2x32xf32>, vector<32x32xf32>, vector<2x32xf32> -> vector<2x32xf32>
    %73 = arith.addf %71, %72 : vector<2x32xf32>
    %74 = arith.addf %73, %5 : vector<2x32xf32>
    %75 = math.tanh %74 : vector<2x32xf32>
    %76 = vector.extract_strided_slice %19 {offsets = [12, 0], sizes = [2, 32], strides = [1, 1]} : vector<16x32xf32> to vector<2x32xf32>
    %cst_37 = arith.constant dense<0.000000e+00> : vector<2x32xf32>
    %77 = tpu.matmul %70, %0, %cst_37 {dimension_numbers = #tpu.dot_dimension_numbers<[1], [0], [0], [1], [0, 0, 1, 1], [], []>} : vector<2x32xf32>, vector<32x32xf32>, vector<2x32xf32> -> vector<2x32xf32>
    %78 = arith.addf %76, %77 : vector<2x32xf32>
    %79 = math.tanh %78 : vector<2x32xf32>
    %cst_38 = arith.constant dense<0.000000e+00> : vector<2x32xf32>
    %80 = tpu.matmul %79, %1, %cst_38 {dimension_numbers = #tpu.dot_dimension_numbers<[1], [0], [0], [1], [0, 0, 1, 1], [], []>} : vector<2x32xf32>, vector<32x32xf32>, vector<2x32xf32> -> vector<2x32xf32>
    %cst_39 = arith.constant dense<0.000000e+00> : vector<2x32xf32>
    %81 = tpu.matmul %75, %2, %cst_39 {dimension_numbers = #tpu.dot_dimension_numbers<[1], [0], [0], [1], [0, 0, 1, 1], [], []>} : vector<2x32xf32>, vector<32x32xf32>, vector<2x32xf32> -> vector<2x32xf32>
    %82 = arith.addf %80, %81 : vector<2x32xf32>
    %83 = arith.addf %82, %5 : vector<2x32xf32>
    %84 = math.tanh %83 : vector<2x32xf32>
    %85 = vector.extract_strided_slice %19 {offsets = [14, 0], sizes = [2, 32], strides = [1, 1]} : vector<16x32xf32> to vector<2x32xf32>
    %cst_40 = arith.constant dense<0.000000e+00> : vector<2x32xf32>
    %86 = tpu.matmul %79, %0, %cst_40 {dimension_numbers = #tpu.dot_dimension_numbers<[1], [0], [0], [1], [0, 0, 1, 1], [], []>} : vector<2x32xf32>, vector<32x32xf32>, vector<2x32xf32> -> vector<2x32xf32>
    %87 = arith.addf %85, %86 : vector<2x32xf32>
    %88 = math.tanh %87 : vector<2x32xf32>
    %cst_41 = arith.constant dense<0.000000e+00> : vector<2x32xf32>
    %89 = tpu.matmul %88, %1, %cst_41 {dimension_numbers = #tpu.dot_dimension_numbers<[1], [0], [0], [1], [0, 0, 1, 1], [], []>} : vector<2x32xf32>, vector<32x32xf32>, vector<2x32xf32> -> vector<2x32xf32>
    %cst_42 = arith.constant dense<0.000000e+00> : vector<2x32xf32>
    %90 = tpu.matmul %84, %2, %cst_42 {dimension_numbers = #tpu.dot_dimension_numbers<[1], [0], [0], [1], [0, 0, 1, 1], [], []>} : vector<2x32xf32>, vector<32x32xf32>, vector<2x32xf32> -> vector<2x32xf32>
    %91 = arith.addf %89, %90 : vector<2x32xf32>
    %92 = arith.addf %91, %5 : vector<2x32xf32>
    %93 = math.tanh %92 : vector<2x32xf32>
    %cst_43 = arith.constant dense<0.000000e+00> : vector<2x128xf32>
    %94 = tpu.matmul %93, %6, %cst_43 {dimension_numbers = #tpu.dot_dimension_numbers<[1], [0], [0], [1], [0, 0, 1, 1], [], []>} : vector<2x32xf32>, vector<32x128xf32>, vector<2x128xf32> -> vector<2x128xf32>
    %95 = vector.broadcast %7 : vector<1x128xf32> to vector<2x128xf32>
    %96 = arith.addf %94, %95 : vector<2x128xf32>
    %c0_44 = arith.constant 0 : index
    %c0_45 = arith.constant 0 : index
    %97 = vector.load %arg9[%c0_44, %c0_45] : memref<2x128xf32, #tpu.memory_space<vmem>>, vector<2x128xf32>
    tpu.vector_store %arg9[%c0_44, %c0_45], %96 {strides = array<i32>} : memref<2x128xf32, #tpu.memory_space<vmem>>, vector<2x128xf32>,
    return
  }
}

</mosaic_0001>

<llo_original>
// kernel: tpu_custom_call.1
$region0: #{tpu_custom_call.1}
  #allocation0 [shape = 'u32[]', space=smem, size = 0x4, offset = 0x4, fixed_abs, tag = 'smem constant byte address 0x4 - core index']
  #allocation1 [shape = 'u32[144,128]{1,0:T(1,128)}', space=vmem, size = 0x12000, scoped, tag = 'internal scratch']
  %s0 = inlined_call_operand.vmem [shape: s32[16,1], index: 0, kind: input, shape index: {}]
  %s1 = inlined_call_operand.vmem [shape: f32[50,32], index: 1, kind: input, shape index: {}]
  %s2 = inlined_call_operand.vmem [shape: f32[32,32], index: 2, kind: input, shape index: {}]
  %s3 = inlined_call_operand.vmem [shape: f32[1,32], index: 3, kind: input, shape index: {}]
  %s4 = inlined_call_operand.vmem [shape: f32[32,32], index: 4, kind: input, shape index: {}]
  %s5 = inlined_call_operand.vmem [shape: f32[32,32], index: 5, kind: input, shape index: {}]
  %s6 = inlined_call_operand.vmem [shape: f32[1,32], index: 6, kind: input, shape index: {}]
  %s7 = inlined_call_operand.vmem [shape: f32[32,128], index: 7, kind: input, shape index: {}]
  %s8 = inlined_call_operand.vmem [shape: f32[1,128], index: 8, kind: input, shape index: {}]
  %s9 = inlined_call_operand.hbm [shape: f32[2,128], index: 9, kind: output, shape index: {}]
  %s10 = sld [smem:[#allocation0]]
  $region46: #{tpu_custom_call.1} parent=0
    _
  %s12 = ssub.s32 1, %s10
  %s13 = scalar_select 0, %s12, %s10
  $region1: #{tpu_custom_call.1} parent=0
    #allocation2 [shape = 'u8[1024]{0}', space=vmem, size = 0x400, scoped, tag = 'output window, operand 0, single buffered']
    #allocation3 [shape = 's32[1]{0}', space=sflag, size = 0x4, scoped, tag = 'scoped memory for tpu_custom_call.1']
    %14 = vsyncpa [#allocation3], 0
    // Predicated region
    $region2: #{tpu_custom_call.1} parent=1 // pred_check
      _
    $region3: #{tpu_custom_call.1} parent=1 // pred_check_branch
      %16 = sbr.rel (0) target = $region5
    $region4: #{tpu_custom_call.1} parent=1 // pred_region
      _
    $region5: #{tpu_custom_call.1} parent=1 // pred_fallthru
      _
    // Predicated region
    $region6: #{tpu_custom_call.1} parent=1 // pred_check
      _
    $region7: #{tpu_custom_call.1} parent=1 // pred_check_branch
      %18 = sbr.rel (0) target = $region9
    $region8: #{tpu_custom_call.1} parent=1 // pred_region
      _
    $region9: #{tpu_custom_call.1} parent=1 // pred_fallthru
      _
    // Predicated region
    $region10: #{tpu_custom_call.1} parent=1 // pred_check
      _
    $region11: #{tpu_custom_call.1} parent=1 // pred_check_branch
      %20 = sbr.rel (0) target = $region13
    $region12: #{tpu_custom_call.1} parent=1 // pred_region
      _
    $region13: #{tpu_custom_call.1} parent=1 // pred_fallthru
      _
    // Predicated region
    $region14: #{tpu_custom_call.1} parent=1 // pred_check
      _
    $region15: #{tpu_custom_call.1} parent=1 // pred_check_branch
      %22 = sbr.rel (0) target = $region17
    $region16: #{tpu_custom_call.1} parent=1 // pred_region
      _
    $region17: #{tpu_custom_call.1} parent=1 // pred_fallthru
      _
    // Predicated region
    $region18: #{tpu_custom_call.1} parent=1 // pred_check
      _
    $region19: #{tpu_custom_call.1} parent=1 // pred_check_branch
      %24 = sbr.rel (0) target = $region21
    $region20: #{tpu_custom_call.1} parent=1 // pred_region
      _
    $region21: #{tpu_custom_call.1} parent=1 // pred_fallthru
      _
    // Predicated region
    $region22: #{tpu_custom_call.1} parent=1 // pred_check
      _
    $region23: #{tpu_custom_call.1} parent=1 // pred_check_branch
      %26 = sbr.rel (0) target = $region25
    $region24: #{tpu_custom_call.1} parent=1 // pred_region
      _
    $region25: #{tpu_custom_call.1} parent=1 // pred_fallthru
      _
    // Predicated region
    $region26: #{tpu_custom_call.1} parent=1 // pred_check
      _
    $region27: #{tpu_custom_call.1} parent=1 // pred_check_branch
      %28 = sbr.rel (0) target = $region29
    $region28: #{tpu_custom_call.1} parent=1 // pred_region
      _
    $region29: #{tpu_custom_call.1} parent=1 // pred_fallthru
      _
    // Predicated region
    $region30: #{tpu_custom_call.1} parent=1 // pred_check
      _
    $region31: #{tpu_custom_call.1} parent=1 // pred_check_branch
      %30 = sbr.rel (0) target = $region33
    $region32: #{tpu_custom_call.1} parent=1 // pred_region
      _
    $region33: #{tpu_custom_call.1} parent=1 // pred_fallthru
      _
    // Predicated region
    $region34: #{tpu_custom_call.1} parent=1 // pred_check
      _
    $region35: #{tpu_custom_call.1} parent=1 // pred_check_branch
      %32 = sbr.rel (0) target = $region37
    $region36: #{tpu_custom_call.1} parent=1 // pred_region
      _
    $region37: #{tpu_custom_call.1} parent=1 // pred_fallthru
      _
    %v33 = vld [vmem:[%s2] sm:$0xff]
    %v34 = vld [vmem:[%s2 + $0x8] sm:$0xff]
    %v35 = vld [vmem:[%s2 + $0x10] sm:$0xff]
    %v36 = vld [vmem:[%s2 + $0x18] sm:$0xff]
    %v37 = vld [vmem:[%s4] sm:$0xff]
    %v38 = vld [vmem:[%s4 + $0x8] sm:$0xff]
    %v39 = vld [vmem:[%s4 + $0x10] sm:$0xff]
    %v40 = vld [vmem:[%s4 + $0x18] sm:$0xff]
    %v41 = vld [vmem:[%s5] sm:$0xff]
    %v42 = vld [vmem:[%s5 + $0x8] sm:$0xff]
    %v43 = vld [vmem:[%s5 + $0x10] sm:$0xff]
    %v44 = vld [vmem:[%s5 + $0x18] sm:$0xff]
    %v45 = vld [vmem:[%s6] sm:$0x1]
    %v47 = vlaneseq
    %v48 = vshrl.u32 %v47, 7
    %v49 = vsub.s32 0, %v48
    %v50 = vrot.slane %v45, %v49
    %v52 = vld [vmem:[%s7] sm:$0xff]
    %v53 = vld [vmem:[%s7 + $0x8] sm:$0xff]
    %v54 = vld [vmem:[%s7 + $0x10] sm:$0xff]
    %v55 = vld [vmem:[%s7 + $0x18] sm:$0xff]
    %v56 = vld [vmem:[%s8] sm:$0x1]
    %v57 = vld [vmem:[%s0] sm:$0xff]
    %v58 = vld [vmem:[%s0 + $0x8] sm:$0xff]
    %v59 = vlaneseq
    %v60 = vand.u32 %v59, 127
    %61 = vset.pattern.permute.xlu0 0
    %62 = vperm.xlu0 %61, %v57
    %v63 = vpop.permute.xlu0 %62
    %64 = vset.pattern.permute.xlu0 0
    %65 = vperm.xlu0 %64, %v58
    %v66 = vpop.permute.xlu0 %65
    %vm67 = vcmp.eq.s32.totalorder %v60, %v63
    %vm68 = vcmp.eq.s32.totalorder %v60, %v66
    %v69 = vsel %vm67, 1, 0
    %v70 = vsel %vm68, 1, 0
    %v71 = vcvt.s32.f32 %v69
    %v72 = vcvt.s32.f32 %v70
    %v73 = vld [vmem:[%s1] sm:$0xff]
    %v74 = vld [vmem:[%s1 + $0x8] sm:$0xff]
    %v75 = vld [vmem:[%s1 + $0x10] sm:$0xff]
    %v76 = vld [vmem:[%s1 + $0x18] sm:$0xff]
    %v77 = vld [vmem:[%s1 + $0x20] sm:$0xff]
    %v78 = vld [vmem:[%s1 + $0x28] sm:$0xff]
    %v79 = vld [vmem:[%s1 + $0x30] sm:$0x3]
    %v80 = vld [vmem:[%s3] sm:$0x1]
    %v82 = vlaneseq
    %v83 = vshrl.u32 %v82, 7
    %v84 = vsub.s32 0, %v83
    %v85 = vrot.slane %v80, %v84
    %vm87 = vcmask 408576
    %v89 = vsel %vm87, %v71, 0
    %v92 = vsel %vm87, %v72, 0
    %vm94 = vcmask 1041408
    %v96 = vsel %vm94, %v79, 0
    %98 = vmatprep.subr.mxu0 0.0
    %99 = vmatpush1.msra.mxu0 %v73
    %100 = vmatprep.subr.mxu0 0.0
    %101 = vmatpush1.msra.mxu0 %v74
    %102 = vmatprep.subr.mxu0 0.0
    %103 = vmatpush1.msra.mxu0 %v75
    %104 = vmatprep.subr.mxu0 0.0
    %105 = vmatpush1.msra.mxu0 %v76
    %106 = vmatprep.subr.mxu0 0.0
    %107 = vmatpush1.msra.mxu0 %v77
    %108 = vmatprep.subr.mxu0 0.0
    %109 = vmatpush1.msra.mxu0 %v78
    %110 = vmatprep.subr.mxu0 0.0
    %111 = vmatpush1.msra.mxu0 %v96
    %112 = vmatprep.subr.mxu0 0.0
    %113 = vmatpush1.msra.mxu0 0.0
    %114 = vmatprep.subr.mxu0 0.0
    %115 = vmatpush1.msra.mxu0 0.0
    %116 = vmatprep.subr.mxu0 0.0
    %117 = vmatpush1.msra.mxu0 0.0
    %118 = vmatprep.subr.mxu0 0.0
    %119 = vmatpush1.msra.mxu0 0.0
    %120 = vmatprep.subr.mxu0 0.0
    %121 = vmatpush1.msra.mxu0 0.0
    %122 = vmatprep.subr.mxu0 0.0
    %123 = vmatpush1.msra.mxu0 0.0
    %124 = vmatprep.subr.mxu0 0.0
    %125 = vmatpush1.msra.mxu0 0.0
    %126 = vmatprep.subr.mxu0 0.0
    %127 = vmatpush1.msra.mxu0 0.0
    %128 = vmatprep.subr.mxu0 0.0
    %129 = vmatpush1.msra.mxu0 0.0
    %130 = vmatprep.subr.mxu0 0.0
    %131 = vmatpush1.msra.mxu0 0.0
    %132 = vmatprep.subr.mxu0 0.0
    %133 = vmatpush1.msra.mxu0 0.0
    %134 = vmatprep.subr.mxu0 0.0
    %135 = vmatpush1.msra.mxu0 0.0
    %136 = vmatprep.subr.mxu0 0.0
    %137 = vmatpush1.msra.mxu0 0.0
    %138 = vmatprep.subr.mxu0 0.0
    %139 = vmatpush1.msra.mxu0 0.0
    %140 = vmatprep.subr.mxu0 0.0
    %141 = vmatpush1.msra.mxu0 0.0
    %142 = vmatprep.subr.mxu0 0.0
    %143 = vmatpush1.msra.mxu0 0.0
    %144 = vmatprep.subr.mxu0 0.0
    %145 = vmatpush1.msra.mxu0 0.0
    %146 = vmatprep.subr.mxu0 0.0
    %147 = vmatpush1.msra.mxu0 0.0
    %148 = vmatprep.subr.mxu0 0.0
    %149 = vmatpush1.msra.mxu0 0.0
    %150 = vmatprep.subr.mxu0 0.0
    %151 = vmatpush1.msra.mxu0 0.0
    %152 = vmatprep.subr.mxu0 0.0
    %153 = vmatpush1.msra.mxu0 0.0
    %154 = vmatprep.subr.mxu0 0.0
    %155 = vmatpush1.msra.mxu0 0.0
    %156 = vmatprep.subr.mxu0 0.0
    %157 = vmatpush1.msra.mxu0 0.0
    %158 = vmatprep.subr.mxu0 0.0
    %159 = vmatpush1.msra.mxu0 0.0
    %160 = vmatprep.subr.mxu0 0.0
    %161 = vmatpush1.msra.mxu0 0.0
    %162 = vmatprep.mubr.f32.mxu0 0.0
    %163 = vmatmul.mubr.f32.gmra.mrb[0].mxu0 %v89
    %v164 = vpop.f32.mrb[0].mxu0
    %v165 = vadd.f32 %v85, %v164
    %v166 = vpop.f32.mrb[0].mxu0
    %167 = vmatprep.mubr.f32.mxu0 0.0
    %168 = vmatmul.mubr.f32.gmra.mrb[0].mxu0 %v92
    %v169 = vpop.f32.mrb[0].mxu0
    %v170 = vadd.f32 %v85, %v169
    %v171 = vpop.f32.mrb[0].mxu0
    %172 = vdwg.mxu0
    %vm173 = vcmask 261120
    %v175 = vsel %vm173, 0.0, 0
    %177 = vmatprep.subr.mxu0 0.0
    %178 = vmatpush1.msra.mxu0 %v33
    %179 = vmatprep.subr.mxu0 0.0
    %180 = vmatpush1.msra.mxu0 %v34
    %181 = vmatprep.subr.mxu0 0.0
    %182 = vmatpush1.msra.mxu0 %v35
    %183 = vmatprep.subr.mxu0 0.0
    %184 = vmatpush1.msra.mxu0 %v36
    %185 = vmatprep.subr.mxu0 0.0
    %186 = vmatpush1.msra.mxu0 0.0
    %187 = vmatprep.subr.mxu0 0.0
    %188 = vmatpush1.msra.mxu0 0.0
    %189 = vmatprep.subr.mxu0 0.0
    %190 = vmatpush1.msra.mxu0 0.0
    %191 = vmatprep.subr.mxu0 0.0
    %192 = vmatpush1.msra.mxu0 0.0
    %193 = vmatprep.subr.mxu0 0.0
    %194 = vmatpush1.msra.mxu0 0.0
    %195 = vmatprep.subr.mxu0 0.0
    %196 = vmatpush1.msra.mxu0 0.0
    %197 = vmatprep.subr.mxu0 0.0
    %198 = vmatpush1.msra.mxu0 0.0
    %199 = vmatprep.subr.mxu0 0.0
    %200 = vmatpush1.msra.mxu0 0.0
    %201 = vmatprep.subr.mxu0 0.0
    %202 = vmatpush1.msra.mxu0 0.0
    %203 = vmatprep.subr.mxu0 0.0
    %204 = vmatpush1.msra.mxu0 0.0
    %205 = vmatprep.subr.mxu0 0.0
    %206 = vmatpush1.msra.mxu0 0.0
    %207 = vmatprep.subr.mxu0 0.0
    %208 = vmatpush1.msra.mxu0 0.0
    %209 = vmatprep.subr.mxu0 0.0
    %210 = vmatpush1.msra.mxu0 0.0
    %211 = vmatprep.subr.mxu0 0.0
    %212 = vmatpush1.msra.mxu0 0.0
    %213 = vmatprep.subr.mxu0 0.0
    %214 = vmatpush1.msra.mxu0 0.0
    %215 = vmatprep.subr.mxu0 0.0
    %216 = vmatpush1.msra.mxu0 0.0
    %217 = vmatprep.subr.mxu0 0.0
    %218 = vmatpush1.msra.mxu0 0.0
    %219 = vmatprep.subr.mxu0 0.0
    %220 = vmatpush1.msra.mxu0 0.0
    %221 = vmatprep.subr.mxu0 0.0
    %222 = vmatpush1.msra.mxu0 0.0
    %223 = vmatprep.subr.mxu0 0.0
    %224 = vmatpush1.msra.mxu0 0.0
    %225 = vmatprep.subr.mxu0 0.0
    %226 = vmatpush1.msra.mxu0 0.0
    %227 = vmatprep.subr.mxu0 0.0
    %228 = vmatpush1.msra.mxu0 0.0
    %229 = vmatprep.subr.mxu0 0.0
    %230 = vmatpush1.msra.mxu0 0.0
    %231 = vmatprep.subr.mxu0 0.0
    %232 = vmatpush1.msra.mxu0 0.0
    %233 = vmatprep.subr.mxu0 0.0
    %234 = vmatpush1.msra.mxu0 0.0
    %235 = vmatprep.subr.mxu0 0.0
    %236 = vmatpush1.msra.mxu0 0.0
    %237 = vmatprep.subr.mxu0 0.0
    %238 = vmatpush1.msra.mxu0 0.0
    %239 = vmatprep.subr.mxu0 0.0
    %240 = vmatpush1.msra.mxu0 0.0
    %241 = vmatprep.mubr.f32.mxu0 0.0
    %242 = vmatmul.mubr.f32.gmra.mrb[0].mxu0 %v175
    %v243 = vpop.f32.mrb[0].mxu0
    %v244 = vadd.f32 0.0, %v243
    %v245 = vpop.f32.mrb[0].mxu0
    %246 = vdwg.mxu0
    %v247 = vadd.f32 %v165, %v244
    %v248 = vtanh.pop %v247
    %249 = vmatprep.subr.mxu0 0.0
    %250 = vmatpush1.msra.mxu0 %v41
    %251 = vmatprep.subr.mxu0 0.0
    %252 = vmatpush1.msra.mxu0 %v42
    %253 = vmatprep.subr.mxu0 0.0
    %254 = vmatpush1.msra.mxu0 %v43
    %255 = vmatprep.subr.mxu0 0.0
    %256 = vmatpush1.msra.mxu0 %v44
    %257 = vmatprep.subr.mxu0 0.0
    %258 = vmatpush1.msra.mxu0 0.0
    %259 = vmatprep.subr.mxu0 0.0
    %260 = vmatpush1.msra.mxu0 0.0
    %261 = vmatprep.subr.mxu0 0.0
    %262 = vmatpush1.msra.mxu0 0.0
    %263 = vmatprep.subr.mxu0 0.0
    %264 = vmatpush1.msra.mxu0 0.0
    %265 = vmatprep.subr.mxu0 0.0
    %266 = vmatpush1.msra.mxu0 0.0
    %267 = vmatprep.subr.mxu0 0.0
    %268 = vmatpush1.msra.mxu0 0.0
    %269 = vmatprep.subr.mxu0 0.0
    %270 = vmatpush1.msra.mxu0 0.0
    %271 = vmatprep.subr.mxu0 0.0
    %272 = vmatpush1.msra.mxu0 0.0
    %273 = vmatprep.subr.mxu0 0.0
    %274 = vmatpush1.msra.mxu0 0.0
    %275 = vmatprep.subr.mxu0 0.0
    %276 = vmatpush1.msra.mxu0 0.0
    %277 = vmatprep.subr.mxu0 0.0
    %278 = vmatpush1.msra.mxu0 0.0
    %279 = vmatprep.subr.mxu0 0.0
    %280 = vmatpush1.msra.mxu0 0.0
    %281 = vmatprep.subr.mxu0 0.0
    %282 = vmatpush1.msra.mxu0 0.0
    %283 = vmatprep.subr.mxu0 0.0
    %284 = vmatpush1.msra.mxu0 0.0
    %285 = vmatprep.subr.mxu0 0.0
    %286 = vmatpush1.msra.mxu0 0.0
    %287 = vmatprep.subr.mxu0 0.0
    %288 = vmatpush1.msra.mxu0 0.0
    %289 = vmatprep.subr.mxu0 0.0
    %290 = vmatpush1.msra.mxu0 0.0
    %291 = vmatprep.subr.mxu0 0.0
    %292 = vmatpush1.msra.mxu0 0.0
    %293 = vmatprep.subr.mxu0 0.0
    %294 = vmatpush1.msra.mxu0 0.0
    %295 = vmatprep.subr.mxu0 0.0
    %296 = vmatpush1.msra.mxu0 0.0
    %297 = vmatprep.subr.mxu0 0.0
    %298 = vmatpush1.msra.mxu0 0.0
    %299 = vmatprep.subr.mxu0 0.0
    %300 = vmatpush1.msra.mxu0 0.0
    %301 = vmatprep.subr.mxu0 0.0
    %302 = vmatpush1.msra.mxu0 0.0
    %303 = vmatprep.subr.mxu0 0.0
    %304 = vmatpush1.msra.mxu0 0.0
    %305 = vmatprep.subr.mxu0 0.0
    %306 = vmatpush1.msra.mxu0 0.0
    %307 = vmatprep.subr.mxu0 0.0
    %308 = vmatpush1.msra.mxu0 0.0
    %309 = vmatprep.subr.mxu0 0.0
    %310 = vmatpush1.msra.mxu0 0.0
    %311 = vmatprep.subr.mxu0 0.0
    %312 = vmatpush1.msra.mxu0 0.0
    %313 = vmatprep.mubr.f32.mxu0 0.0
    %314 = vmatmul.mubr.f32.gmra.mrb[0].mxu0 %v175
    %v315 = vpop.f32.mrb[0].mxu0
    %v316 = vadd.f32 0.0, %v315
    %v317 = vpop.f32.mrb[0].mxu0
    %318 = vdwg.mxu0
    %v320 = vsel %vm173, %v248, 0
    %322 = vmatprep.subr.mxu0 0.0
    %323 = vmatpush1.msra.mxu0 %v37
    %324 = vmatprep.subr.mxu0 0.0
    %325 = vmatpush1.msra.mxu0 %v38
    %326 = vmatprep.subr.mxu0 0.0
    %327 = vmatpush1.msra.mxu0 %v39
    %328 = vmatprep.subr.mxu0 0.0
    %329 = vmatpush1.msra.mxu0 %v40
    %330 = vmatprep.subr.mxu0 0.0
    %331 = vmatpush1.msra.mxu0 0.0
    %332 = vmatprep.subr.mxu0 0.0
    %333 = vmatpush1.msra.mxu0 0.0
    %334 = vmatprep.subr.mxu0 0.0
    %335 = vmatpush1.msra.mxu0 0.0
    %336 = vmatprep.subr.mxu0 0.0
    %337 = vmatpush1.msra.mxu0 0.0
    %338 = vmatprep.subr.mxu0 0.0
    %339 = vmatpush1.msra.mxu0 0.0
    %340 = vmatprep.subr.mxu0 0.0
    %341 = vmatpush1.msra.mxu0 0.0
    %342 = vmatprep.subr.mxu0 0.0
    %343 = vmatpush1.msra.mxu0 0.0
    %344 = vmatprep.subr.mxu0 0.0
    %345 = vmatpush1.msra.mxu0 0.0
    %346 = vmatprep.subr.mxu0 0.0
    %347 = vmatpush1.msra.mxu0 0.0
    %348 = vmatprep.subr.mxu0 0.0
    %349 = vmatpush1.msra.mxu0 0.0
    %350 = vmatprep.subr.mxu0 0.0
    %351 = vmatpush1.msra.mxu0 0.0
    %352 = vmatprep.subr.mxu0 0.0
    %353 = vmatpush1.msra.mxu0 0.0
    %354 = vmatprep.subr.mxu0 0.0
    %355 = vmatpush1.msra.mxu0 0.0
    %356 = vmatprep.subr.mxu0 0.0
    %357 = vmatpush1.msra.mxu0 0.0
    %358 = vmatprep.subr.mxu0 0.0
    %359 = vmatpush1.msra.mxu0 0.0
    %360 = vmatprep.subr.mxu0 0.0
    %361 = vmatpush1.msra.mxu0 0.0
    %362 = vmatprep.subr.mxu0 0.0
    %363 = vmatpush1.msra.mxu0 0.0
    %364 = vmatprep.subr.mxu0 0.0
    %365 = vmatpush1.msra.mxu0 0.0
    %366 = vmatprep.subr.mxu0 0.0
    %367 = vmatpush1.msra.mxu0 0.0
    %368 = vmatprep.subr.mxu0 0.0
    %369 = vmatpush1.msra.mxu0 0.0
    %370 = vmatprep.subr.mxu0 0.0
    %371 = vmatpush1.msra.mxu0 0.0
    %372 = vmatprep.subr.mxu0 0.0
    %373 = vmatpush1.msra.mxu0 0.0
    %374 = vmatprep.subr.mxu0 0.0
    %375 = vmatpush1.msra.mxu0 0.0
    %376 = vmatprep.subr.mxu0 0.0
    %377 = vmatpush1.msra.mxu0 0.0
    %378 = vmatprep.subr.mxu0 0.0
    %379 = vmatpush1.msra.mxu0 0.0
    %380 = vmatprep.subr.mxu0 0.0
    %381 = vmatpush1.msra.mxu0 0.0
    %382 = vmatprep.subr.mxu0 0.0
    %383 = vmatpush1.msra.mxu0 0.0
    %384 = vmatprep.subr.mxu0 0.0
    %385 = vmatpush1.msra.mxu0 0.0
    %386 = vmatprep.mubr.f32.mxu0 0.0
    %387 = vmatmul.mubr.f32.gmra.mrb[0].mxu0 %v320
    %v388 = vpop.f32.mrb[0].mxu0
    %v389 = vadd.f32 %v316, %v388
    %v390 = vpop.f32.mrb[0].mxu0
    %391 = vdwg.mxu0
    %v392 = vadd.f32 %v389, %v50
    %v393 = vtanh.pop %v392
    %394 = vmatprep.subr.mxu0 0.0
    %395 = vmatpush1.msra.mxu0 %v33
    %396 = vmatprep.subr.mxu0 0.0
    %397 = vmatpush1.msra.mxu0 %v34
    %398 = vmatprep.subr.mxu0 0.0
    %399 = vmatpush1.msra.mxu0 %v35
    %400 = vmatprep.subr.mxu0 0.0
    %401 = vmatpush1.msra.mxu0 %v36
    %402 = vmatprep.subr.mxu0 0.0
    %403 = vmatpush1.msra.mxu0 0.0
    %404 = vmatprep.subr.mxu0 0.0
    %405 = vmatpush1.msra.mxu0 0.0
    %406 = vmatprep.subr.mxu0 0.0
    %407 = vmatpush1.msra.mxu0 0.0
    %408 = vmatprep.subr.mxu0 0.0
    %409 = vmatpush1.msra.mxu0 0.0
    %410 = vmatprep.subr.mxu0 0.0
    %411 = vmatpush1.msra.mxu0 0.0
    %412 = vmatprep.subr.mxu0 0.0
    %413 = vmatpush1.msra.mxu0 0.0
    %414 = vmatprep.subr.mxu0 0.0
    %415 = vmatpush1.msra.mxu0 0.0
    %416 = vmatprep.subr.mxu0 0.0
    %417 = vmatpush1.msra.mxu0 0.0
    %418 = vmatprep.subr.mxu0 0.0
    %419 = vmatpush1.msra.mxu0 0.0
    %420 = vmatprep.subr.mxu0 0.0
    %421 = vmatpush1.msra.mxu0 0.0
    %422 = vmatprep.subr.mxu0 0.0
    %423 = vmatpush1.msra.mxu0 0.0
    %424 = vmatprep.subr.mxu0 0.0
    %425 = vmatpush1.msra.mxu0 0.0
    %426 = vmatprep.subr.mxu0 0.0
    %427 = vmatpush1.msra.mxu0 0.0
    %428 = vmatprep.subr.mxu0 0.0
    %429 = vmatpush1.msra.mxu0 0.0
    %430 = vmatprep.subr.mxu0 0.0
    %431 = vmatpush1.msra.mxu0 0.0
    %432 = vmatprep.subr.mxu0 0.0
    %433 = vmatpush1.msra.mxu0 0.0
    %434 = vmatprep.subr.mxu0 0.0
    %435 = vmatpush1.msra.mxu0 0.0
    %436 = vmatprep.subr.mxu0 0.0
    %437 = vmatpush1.msra.mxu0 0.0
    %438 = vmatprep.subr.mxu0 0.0
    %439 = vmatpush1.msra.mxu0 0.0
    %440 = vmatprep.subr.mxu0 0.0
    %441 = vmatpush1.msra.mxu0 0.0
    %442 = vmatprep.subr.mxu0 0.0
    %443 = vmatpush1.msra.mxu0 0.0
    %444 = vmatprep.subr.mxu0 0.0
    %445 = vmatpush1.msra.mxu0 0.0
    %446 = vmatprep.subr.mxu0 0.0
    %447 = vmatpush1.msra.mxu0 0.0
    %448 = vmatprep.subr.mxu0 0.0
    %449 = vmatpush1.msra.mxu0 0.0
    %450 = vmatprep.subr.mxu0 0.0
    %451 = vmatpush1.msra.mxu0 0.0
    %452 = vmatprep.subr.mxu0 0.0
    %453 = vmatpush1.msra.mxu0 0.0
    %454 = vmatprep.subr.mxu0 0.0
    %455 = vmatpush1.msra.mxu0 0.0
    %456 = vmatprep.subr.mxu0 0.0
    %457 = vmatpush1.msra.mxu0 0.0
    %458 = vmatprep.mubr.f32.mxu0 0.0
    %459 = vmatmul.mubr.f32.gmra.mrb[0].mxu0 %v320
    %v460 = vpop.f32.mrb[0].mxu0
    %v461 = vadd.f32 0.0, %v460
    %v462 = vpop.f32.mrb[0].mxu0
    %463 = vdwg.mxu0
    %v465 = vrot.slane %v461, 6
    %v467 = vadd.f32 %v165, %v465
    %v468 = vtanh.pop %v467
    %v470 = vsel %vm173, %v393, 0
    %472 = vmatprep.subr.mxu0 0.0
    %473 = vmatpush1.msra.mxu0 %v41
    %474 = vmatprep.subr.mxu0 0.0
    %475 = vmatpush1.msra.mxu0 %v42
    %476 = vmatprep.subr.mxu0 0.0
    %477 = vmatpush1.msra.mxu0 %v43
    %478 = vmatprep.subr.mxu0 0.0
    %479 = vmatpush1.msra.mxu0 %v44
    %480 = vmatprep.subr.mxu0 0.0
    %481 = vmatpush1.msra.mxu0 0.0
    %482 = vmatprep.subr.mxu0 0.0
    %483 = vmatpush1.msra.mxu0 0.0
    %484 = vmatprep.subr.mxu0 0.0
    %485 = vmatpush1.msra.mxu0 0.0
    %486 = vmatprep.subr.mxu0 0.0
    %487 = vmatpush1.msra.mxu0 0.0
    %488 = vmatprep.subr.mxu0 0.0
    %489 = vmatpush1.msra.mxu0 0.0
    %490 = vmatprep.subr.mxu0 0.0
    %491 = vmatpush1.msra.mxu0 0.0
    %492 = vmatprep.subr.mxu0 0.0
    %493 = vmatpush1.msra.mxu0 0.0
    %494 = vmatprep.subr.mxu0 0.0
    %495 = vmatpush1.msra.mxu0 0.0
    %496 = vmatprep.subr.mxu0 0.0
    %497 = vmatpush1.msra.mxu0 0.0
    %498 = vmatprep.subr.mxu0 0.0
    %499 = vmatpush1.msra.mxu0 0.0
    %500 = vmatprep.subr.mxu0 0.0
    %501 = vmatpush1.msra.mxu0 0.0
    %502 = vmatprep.subr.mxu0 0.0
    %503 = vmatpush1.msra.mxu0 0.0
    %504 = vmatprep.subr.mxu0 0.0
    %505 = vmatpush1.msra.mxu0 0.0
    %506 = vmatprep.subr.mxu0 0.0
    %507 = vmatpush1.msra.mxu0 0.0
    %508 = vmatprep.subr.mxu0 0.0
    %509 = vmatpush1.msra.mxu0 0.0
    %510 = vmatprep.subr.mxu0 0.0
    %511 = vmatpush1.msra.mxu0 0.0
    %512 = vmatprep.subr.mxu0 0.0
    %513 = vmatpush1.msra.mxu0 0.0
    %514 = vmatprep.subr.mxu0 0.0
    %515 = vmatpush1.msra.mxu0 0.0
    %516 = vmatprep.subr.mxu0 0.0
    %517 = vmatpush1.msra.mxu0 0.0
    %518 = vmatprep.subr.mxu0 0.0
    %519 = vmatpush1.msra.mxu0 0.0
    %520 = vmatprep.subr.mxu0 0.0
    %521 = vmatpush1.msra.mxu0 0.0
    %522 = vmatprep.subr.mxu0 0.0
    %523 = vmatpush1.msra.mxu0 0.0
    %524 = vmatprep.subr.mxu0 0.0
    %525 = vmatpush1.msra.mxu0 0.0
    %526 = vmatprep.subr.mxu0 0.0
    %527 = vmatpush1.msra.mxu0 0.0
    %528 = vmatprep.subr.mxu0 0.0
    %529 = vmatpush1.msra.mxu0 0.0
    %530 = vmatprep.subr.mxu0 0.0
    %531 = vmatpush1.msra.mxu0 0.0
    %532 = vmatprep.subr.mxu0 0.0
    %533 = vmatpush1.msra.mxu0 0.0
    %534 = vmatprep.subr.mxu0 0.0
    %535 = vmatpush1.msra.mxu0 0.0
    %536 = vmatprep.mubr.f32.mxu0 0.0
    %537 = vmatmul.mubr.f32.gmra.mrb[0].mxu0 %v470
    %v538 = vpop.f32.mrb[0].mxu0
    %v539 = vadd.f32 0.0, %v538
    %v540 = vpop.f32.mrb[0].mxu0
    %541 = vdwg.mxu0
    %v543 = vrot.slane %v468, 2
    %v544 = vsel %vm173, %v543, 0
    %546 = vmatprep.subr.mxu0 0.0
    %547 = vmatpush1.msra.mxu0 %v37
    %548 = vmatprep.subr.mxu0 0.0
    %549 = vmatpush1.msra.mxu0 %v38
    %550 = vmatprep.subr.mxu0 0.0
    %551 = vmatpush1.msra.mxu0 %v39
    %552 = vmatprep.subr.mxu0 0.0
    %553 = vmatpush1.msra.mxu0 %v40
    %554 = vmatprep.subr.mxu0 0.0
    %555 = vmatpush1.msra.mxu0 0.0
    %556 = vmatprep.subr.mxu0 0.0
    %557 = vmatpush1.msra.mxu0 0.0
    %558 = vmatprep.subr.mxu0 0.0
    %559 = vmatpush1.msra.mxu0 0.0
    %560 = vmatprep.subr.mxu0 0.0
    %561 = vmatpush1.msra.mxu0 0.0
    %562 = vmatprep.subr.mxu0 0.0
    %563 = vmatpush1.msra.mxu0 0.0
    %564 = vmatprep.subr.mxu0 0.0
    %565 = vmatpush1.msra.mxu0 0.0
    %566 = vmatprep.subr.mxu0 0.0
    %567 = vmatpush1.msra.mxu0 0.0
    %568 = vmatprep.subr.mxu0 0.0
    %569 = vmatpush1.msra.mxu0 0.0
    %570 = vmatprep.subr.mxu0 0.0
    %571 = vmatpush1.msra.mxu0 0.0
    %572 = vmatprep.subr.mxu0 0.0
    %573 = vmatpush1.msra.mxu0 0.0
    %574 = vmatprep.subr.mxu0 0.0
    %575 = vmatpush1.msra.mxu0 0.0
    %576 = vmatprep.subr.mxu0 0.0
    %577 = vmatpush1.msra.mxu0 0.0
    %578 = vmatprep.subr.mxu0 0.0
    %579 = vmatpush1.msra.mxu0 0.0
    %580 = vmatprep.subr.mxu0 0.0
    %581 = vmatpush1.msra.mxu0 0.0
    %582 = vmatprep.subr.mxu0 0.0
    %583 = vmatpush1.msra.mxu0 0.0
    %584 = vmatprep.subr.mxu0 0.0
    %585 = vmatpush1.msra.mxu0 0.0
    %586 = vmatprep.subr.mxu0 0.0
    %587 = vmatpush1.msra.mxu0 0.0
    %588 = vmatprep.subr.mxu0 0.0
    %589 = vmatpush1.msra.mxu0 0.0
    %590 = vmatprep.subr.mxu0 0.0
    %591 = vmatpush1.msra.mxu0 0.0
    %592 = vmatprep.subr.mxu0 0.0
    %593 = vmatpush1.msra.mxu0 0.0
    %594 = vmatprep.subr.mxu0 0.0
    %595 = vmatpush1.msra.mxu0 0.0
    %596 = vmatprep.subr.mxu0 0.0
    %597 = vmatpush1.msra.mxu0 0.0
    %598 = vmatprep.subr.mxu0 0.0
    %599 = vmatpush1.msra.mxu0 0.0
    %600 = vmatprep.subr.mxu0 0.0
    %601 = vmatpush1.msra.mxu0 0.0
    %602 = vmatprep.subr.mxu0 0.0
    %603 = vmatpush1.msra.mxu0 0.0
    %604 = vmatprep.subr.mxu0 0.0
    %605 = vmatpush1.msra.mxu0 0.0
    %606 = vmatprep.subr.mxu0 0.0
    %607 = vmatpush1.msra.mxu0 0.0
    %608 = vmatprep.subr.mxu0 0.0
    %609 = vmatpush1.msra.mxu0 0.0
    %610 = vmatprep.mubr.f32.mxu0 0.0
    %611 = vmatmul.mubr.f32.gmra.mrb[0].mxu0 %v544
    %v612 = vpop.f32.mrb[0].mxu0
    %v613 = vadd.f32 %v539, %v612
    %v614 = vpop.f32.mrb[0].mxu0
    %615 = vdwg.mxu0
    %v616 = vadd.f32 %v613, %v50
    %v617 = vtanh.pop %v616
    %618 = vmatprep.subr.mxu0 0.0
    %619 = vmatpush1.msra.mxu0 %v33
    %620 = vmatprep.subr.mxu0 0.0
    %621 = vmatpush1.msra.mxu0 %v34
    %622 = vmatprep.subr.mxu0 0.0
    %623 = vmatpush1.msra.mxu0 %v35
    %624 = vmatprep.subr.mxu0 0.0
    %625 = vmatpush1.msra.mxu0 %v36
    %626 = vmatprep.subr.mxu0 0.0
    %627 = vmatpush1.msra.mxu0 0.0
    %628 = vmatprep.subr.mxu0 0.0
    %629 = vmatpush1.msra.mxu0 0.0
    %630 = vmatprep.subr.mxu0 0.0
    %631 = vmatpush1.msra.mxu0 0.0
    %632 = vmatprep.subr.mxu0 0.0
    %633 = vmatpush1.msra.mxu0 0.0
    %634 = vmatprep.subr.mxu0 0.0
    %635 = vmatpush1.msra.mxu0 0.0
    %636 = vmatprep.subr.mxu0 0.0
    %637 = vmatpush1.msra.mxu0 0.0
    %638 = vmatprep.subr.mxu0 0.0
    %639 = vmatpush1.msra.mxu0 0.0
    %640 = vmatprep.subr.mxu0 0.0
    %641 = vmatpush1.msra.mxu0 0.0
    %642 = vmatprep.subr.mxu0 0.0
    %643 = vmatpush1.msra.mxu0 0.0
    %644 = vmatprep.subr.mxu0 0.0
    %645 = vmatpush1.msra.mxu0 0.0
    %646 = vmatprep.subr.mxu0 0.0
    %647 = vmatpush1.msra.mxu0 0.0
    %648 = vmatprep.subr.mxu0 0.0
    %649 = vmatpush1.msra.mxu0 0.0
    %650 = vmatprep.subr.mxu0 0.0
    %651 = vmatpush1.msra.mxu0 0.0
    %652 = vmatprep.subr.mxu0 0.0
    %653 = vmatpush1.msra.mxu0 0.0
    %654 = vmatprep.subr.mxu0 0.0
    %655 = vmatpush1.msra.mxu0 0.0
    %656 = vmatprep.subr.mxu0 0.0
    %657 = vmatpush1.msra.mxu0 0.0
    %658 = vmatprep.subr.mxu0 0.0
    %659 = vmatpush1.msra.mxu0 0.0
    %660 = vmatprep.subr.mxu0 0.0
    %661 = vmatpush1.msra.mxu0 0.0
    %662 = vmatprep.subr.mxu0 0.0
    %663 = vmatpush1.msra.mxu0 0.0
    %664 = vmatprep.subr.mxu0 0.0
    %665 = vmatpush1.msra.mxu0 0.0
    %666 = vmatprep.subr.mxu0 0.0
    %667 = vmatpush1.msra.mxu0 0.0
    %668 = vmatprep.subr.mxu0 0.0
    %669 = vmatpush1.msra.mxu0 0.0
    %670 = vmatprep.subr.mxu0 0.0
    %671 = vmatpush1.msra.mxu0 0.0
    %672 = vmatprep.subr.mxu0 0.0
    %673 = vmatpush1.msra.mxu0 0.0
    %674 = vmatprep.subr.mxu0 0.0
    %675 = vmatpush1.msra.mxu0 0.0
    %676 = vmatprep.subr.mxu0 0.0
    %677 = vmatpush1.msra.mxu0 0.0
    %678 = vmatprep.subr.mxu0 0.0
    %679 = vmatpush1.msra.mxu0 0.0
    %680 = vmatprep.subr.mxu0 0.0
    %681 = vmatpush1.msra.mxu0 0.0
    %682 = vmatprep.mubr.f32.mxu0 0.0
    %683 = vmatmul.mubr.f32.gmra.mrb[0].mxu0 %v544
    %v684 = vpop.f32.mrb[0].mxu0
    %v685 = vadd.f32 0.0, %v684
    %v686 = vpop.f32.mrb[0].mxu0
    %687 = vdwg.mxu0
    %v689 = vrot.slane %v685, 4
    %v691 = vadd.f32 %v165, %v689
    %v692 = vtanh.pop %v691
    %v694 = vsel %vm173, %v617, 0
    %696 = vmatprep.subr.mxu0 0.0
    %697 = vmatpush1.msra.mxu0 %v41
    %698 = vmatprep.subr.mxu0 0.0
    %699 = vmatpush1.msra.mxu0 %v42
    %700 = vmatprep.subr.mxu0 0.0
    %701 = vmatpush1.msra.mxu0 %v43
    %702 = vmatprep.subr.mxu0 0.0
    %703 = vmatpush1.msra.mxu0 %v44
    %704 = vmatprep.subr.mxu0 0.0
    %705 = vmatpush1.msra.mxu0 0.0
    %706 = vmatprep.subr.mxu0 0.0
    %707 = vmatpush1.msra.mxu0 0.0
    %708 = vmatprep.subr.mxu0 0.0
    %709 = vmatpush1.msra.mxu0 0.0
    %710 = vmatprep.subr.mxu0 0.0
    %711 = vmatpush1.msra.mxu0 0.0
    %712 = vmatprep.subr.mxu0 0.0
    %713 = vmatpush1.msra.mxu0 0.0
    %714 = vmatprep.subr.mxu0 0.0
    %715 = vmatpush1.msra.mxu0 0.0
    %716 = vmatprep.subr.mxu0 0.0
    %717 = vmatpush1.msra.mxu0 0.0
    %718 = vmatprep.subr.mxu0 0.0
    %719 = vmatpush1.msra.mxu0 0.0
    %720 = vmatprep.subr.mxu0 0.0
    %721 = vmatpush1.msra.mxu0 0.0
    %722 = vmatprep.subr.mxu0 0.0
    %723 = vmatpush1.msra.mxu0 0.0
    %724 = vmatprep.subr.mxu0 0.0
    %725 = vmatpush1.msra.mxu0 0.0
    %726 = vmatprep.subr.mxu0 0.0
    %727 = vmatpush1.msra.mxu0 0.0
    %728 = vmatprep.subr.mxu0 0.0
    %729 = vmatpush1.msra.mxu0 0.0
    %730 = vmatprep.subr.mxu0 0.0
    %731 = vmatpush1.msra.mxu0 0.0
    %732 = vmatprep.subr.mxu0 0.0
    %733 = vmatpush1.msra.mxu0 0.0
    %734 = vmatprep.subr.mxu0 0.0
    %735 = vmatpush1.msra.mxu0 0.0
    %736 = vmatprep.subr.mxu0 0.0
    %737 = vmatpush1.msra.mxu0 0.0
    %738 = vmatprep.subr.mxu0 0.0
    %739 = vmatpush1.msra.mxu0 0.0
    %740 = vmatprep.subr.mxu0 0.0
    %741 = vmatpush1.msra.mxu0 0.0
    %742 = vmatprep.subr.mxu0 0.0
    %743 = vmatpush1.msra.mxu0 0.0
    %744 = vmatprep.subr.mxu0 0.0
    %745 = vmatpush1.msra.mxu0 0.0
    %746 = vmatprep.subr.mxu0 0.0
    %747 = vmatpush1.msra.mxu0 0.0
    %748 = vmatprep.subr.mxu0 0.0
    %749 = vmatpush1.msra.mxu0 0.0
    %750 = vmatprep.subr.mxu0 0.0
    %751 = vmatpush1.msra.mxu0 0.0
    %752 = vmatprep.subr.mxu0 0.0
    %753 = vmatpush1.msra.mxu0 0.0
    %754 = vmatprep.subr.mxu0 0.0
    %755 = vmatpush1.msra.mxu0 0.0
    %756 = vmatprep.subr.mxu0 0.0
    %757 = vmatpush1.msra.mxu0 0.0
    %758 = vmatprep.subr.mxu0 0.0
    %759 = vmatpush1.msra.mxu0 0.0
    %760 = vmatprep.mubr.f32.mxu0 0.0
    %761 = vmatmul.mubr.f32.gmra.mrb[0].mxu0 %v694
    %v762 = vpop.f32.mrb[0].mxu0
    %v763 = vadd.f32 0.0, %v762
    %v764 = vpop.f32.mrb[0].mxu0
    %765 = vdwg.mxu0
    %v767 = vrot.slane %v692, 4
    %v768 = vsel %vm173, %v767, 0
    %770 = vmatprep.subr.mxu0 0.0
    %771 = vmatpush1.msra.mxu0 %v37
    %772 = vmatprep.subr.mxu0 0.0
    %773 = vmatpush1.msra.mxu0 %v38
    %774 = vmatprep.subr.mxu0 0.0
    %775 = vmatpush1.msra.mxu0 %v39
    %776 = vmatprep.subr.mxu0 0.0
    %777 = vmatpush1.msra.mxu0 %v40
    %778 = vmatprep.subr.mxu0 0.0
    %779 = vmatpush1.msra.mxu0 0.0
    %780 = vmatprep.subr.mxu0 0.0
    %781 = vmatpush1.msra.mxu0 0.0
    %782 = vmatprep.subr.mxu0 0.0
    %783 = vmatpush1.msra.mxu0 0.0
    %784 = vmatprep.subr.mxu0 0.0
    %785 = vmatpush1.msra.mxu0 0.0
    %786 = vmatprep.subr.mxu0 0.0
    %787 = vmatpush1.msra.mxu0 0.0
    %788 = vmatprep.subr.mxu0 0.0
    %789 = vmatpush1.msra.mxu0 0.0
    %790 = vmatprep.subr.mxu0 0.0
    %791 = vmatpush1.msra.mxu0 0.0
    %792 = vmatprep.subr.mxu0 0.0
    %793 = vmatpush1.msra.mxu0 0.0
    %794 = vmatprep.subr.mxu0 0.0
    %795 = vmatpush1.msra.mxu0 0.0
    %796 = vmatprep.subr.mxu0 0.0
    %797 = vmatpush1.msra.mxu0 0.0
    %798 = vmatprep.subr.mxu0 0.0
    %799 = vmatpush1.msra.mxu0 0.0
    %800 = vmatprep.subr.mxu0 0.0
    %801 = vmatpush1.msra.mxu0 0.0
    %802 = vmatprep.subr.mxu0 0.0
    %803 = vmatpush1.msra.mxu0 0.0
    %804 = vmatprep.subr.mxu0 0.0
    %805 = vmatpush1.msra.mxu0 0.0
    %806 = vmatprep.subr.mxu0 0.0
    %807 = vmatpush1.msra.mxu0 0.0
    %808 = vmatprep.subr.mxu0 0.0
    %809 = vmatpush1.msra.mxu0 0.0
    %810 = vmatprep.subr.mxu0 0.0
    %811 = vmatpush1.msra.mxu0 0.0
    %812 = vmatprep.subr.mxu0 0.0
    %813 = vmatpush1.msra.mxu0 0.0
    %814 = vmatprep.subr.mxu0 0.0
    %815 = vmatpush1.msra.mxu0 0.0
    %816 = vmatprep.subr.mxu0 0.0
    %817 = vmatpush1.msra.mxu0 0.0
    %818 = vmatprep.subr.mxu0 0.0
    %819 = vmatpush1.msra.mxu0 0.0
    %820 = vmatprep.subr.mxu0 0.0
    %821 = vmatpush1.msra.mxu0 0.0
    %822 = vmatprep.subr.mxu0 0.0
    %823 = vmatpush1.msra.mxu0 0.0
    %824 = vmatprep.subr.mxu0 0.0
    %825 = vmatpush1.msra.mxu0 0.0
    %826 = vmatprep.subr.mxu0 0.0
    %827 = vmatpush1.msra.mxu0 0.0
    %828 = vmatprep.subr.mxu0 0.0
    %829 = vmatpush1.msra.mxu0 0.0
    %830 = vmatprep.subr.mxu0 0.0
    %831 = vmatpush1.msra.mxu0 0.0
    %832 = vmatprep.subr.mxu0 0.0
    %833 = vmatpush1.msra.mxu0 0.0
    %834 = vmatprep.mubr.f32.mxu0 0.0
    %835 = vmatmul.mubr.f32.gmra.mrb[0].mxu0 %v768
    %v836 = vpop.f32.mrb[0].mxu0
    %v837 = vadd.f32 %v763, %v836
    %v838 = vpop.f32.mrb[0].mxu0
    %839 = vdwg.mxu0
    %v840 = vadd.f32 %v837, %v50
    %v841 = vtanh.pop %v840
    %842 = vmatprep.subr.mxu0 0.0
    %843 = vmatpush1.msra.mxu0 %v33
    %844 = vmatprep.subr.mxu0 0.0
    %845 = vmatpush1.msra.mxu0 %v34
    %846 = vmatprep.subr.mxu0 0.0
    %847 = vmatpush1.msra.mxu0 %v35
    %848 = vmatprep.subr.mxu0 0.0
    %849 = vmatpush1.msra.mxu0 %v36
    %850 = vmatprep.subr.mxu0 0.0
    %851 = vmatpush1.msra.mxu0 0.0
    %852 = vmatprep.subr.mxu0 0.0
    %853 = vmatpush1.msra.mxu0 0.0
    %854 = vmatprep.subr.mxu0 0.0
    %855 = vmatpush1.msra.mxu0 0.0
    %856 = vmatprep.subr.mxu0 0.0
    %857 = vmatpush1.msra.mxu0 0.0
    %858 = vmatprep.subr.mxu0 0.0
    %859 = vmatpush1.msra.mxu0 0.0
    %860 = vmatprep.subr.mxu0 0.0
    %861 = vmatpush1.msra.mxu0 0.0
    %862 = vmatprep.subr.mxu0 0.0
    %863 = vmatpush1.msra.mxu0 0.0
    %864 = vmatprep.subr.mxu0 0.0
    %865 = vmatpush1.msra.mxu0 0.0
    %866 = vmatprep.subr.mxu0 0.0
    %867 = vmatpush1.msra.mxu0 0.0
    %868 = vmatprep.subr.mxu0 0.0
    %869 = vmatpush1.msra.mxu0 0.0
    %870 = vmatprep.subr.mxu0 0.0
    %871 = vmatpush1.msra.mxu0 0.0
    %872 = vmatprep.subr.mxu0 0.0
    %873 = vmatpush1.msra.mxu0 0.0
    %874 = vmatprep.subr.mxu0 0.0
    %875 = vmatpush1.msra.mxu0 0.0
    %876 = vmatprep.subr.mxu0 0.0
    %877 = vmatpush1.msra.mxu0 0.0
    %878 = vmatprep.subr.mxu0 0.0
    %879 = vmatpush1.msra.mxu0 0.0
    %880 = vmatprep.subr.mxu0 0.0
    %881 = vmatpush1.msra.mxu0 0.0
    %882 = vmatprep.subr.mxu0 0.0
    %883 = vmatpush1.msra.mxu0 0.0
    %884 = vmatprep.subr.mxu0 0.0
    %885 = vmatpush1.msra.mxu0 0.0
    %886 = vmatprep.subr.mxu0 0.0
    %887 = vmatpush1.msra.mxu0 0.0
    %888 = vmatprep.subr.mxu0 0.0
    %889 = vmatpush1.msra.mxu0 0.0
    %890 = vmatprep.subr.mxu0 0.0
    %891 = vmatpush1.msra.mxu0 0.0
    %892 = vmatprep.subr.mxu0 0.0
    %893 = vmatpush1.msra.mxu0 0.0
    %894 = vmatprep.subr.mxu0 0.0
    %895 = vmatpush1.msra.mxu0 0.0
    %896 = vmatprep.subr.mxu0 0.0
    %897 = vmatpush1.msra.mxu0 0.0
    %898 = vmatprep.subr.mxu0 0.0
    %899 = vmatpush1.msra.mxu0 0.0
    %900 = vmatprep.subr.mxu0 0.0
    %901 = vmatpush1.msra.mxu0 0.0
    %902 = vmatprep.subr.mxu0 0.0
    %903 = vmatpush1.msra.mxu0 0.0
    %904 = vmatprep.subr.mxu0 0.0
    %905 = vmatpush1.msra.mxu0 0.0
    %906 = vmatprep.mubr.f32.mxu0 0.0
    %907 = vmatmul.mubr.f32.gmra.mrb[0].mxu0 %v768
    %v908 = vpop.f32.mrb[0].mxu0
    %v909 = vadd.f32 0.0, %v908
    %v910 = vpop.f32.mrb[0].mxu0
    %911 = vdwg.mxu0
    %v913 = vrot.slane %v909, 2
    %v915 = vadd.f32 %v165, %v913
    %v916 = vtanh.pop %v915
    %v918 = vsel %vm173, %v841, 0
    %920 = vmatprep.subr.mxu0 0.0
    %921 = vmatpush1.msra.mxu0 %v41
    %922 = vmatprep.subr.mxu0 0.0
    %923 = vmatpush1.msra.mxu0 %v42
    %924 = vmatprep.subr.mxu0 0.0
    %925 = vmatpush1.msra.mxu0 %v43
    %926 = vmatprep.subr.mxu0 0.0
    %927 = vmatpush1.msra.mxu0 %v44
    %928 = vmatprep.subr.mxu0 0.0
    %929 = vmatpush1.msra.mxu0 0.0
    %930 = vmatprep.subr.mxu0 0.0
    %931 = vmatpush1.msra.mxu0 0.0
    %932 = vmatprep.subr.mxu0 0.0
    %933 = vmatpush1.msra.mxu0 0.0
    %934 = vmatprep.subr.mxu0 0.0
    %935 = vmatpush1.msra.mxu0 0.0
    %936 = vmatprep.subr.mxu0 0.0
    %937 = vmatpush1.msra.mxu0 0.0
    %938 = vmatprep.subr.mxu0 0.0
    %939 = vmatpush1.msra.mxu0 0.0
    %940 = vmatprep.subr.mxu0 0.0
    %941 = vmatpush1.msra.mxu0 0.0
    %942 = vmatprep.subr.mxu0 0.0
    %943 = vmatpush1.msra.mxu0 0.0
    %944 = vmatprep.subr.mxu0 0.0
    %945 = vmatpush1.msra.mxu0 0.0
    %946 = vmatprep.subr.mxu0 0.0
    %947 = vmatpush1.msra.mxu0 0.0
    %948 = vmatprep.subr.mxu0 0.0
    %949 = vmatpush1.msra.mxu0 0.0
    %950 = vmatprep.subr.mxu0 0.0
    %951 = vmatpush1.msra.mxu0 0.0
    %952 = vmatprep.subr.mxu0 0.0
    %953 = vmatpush1.msra.mxu0 0.0
    %954 = vmatprep.subr.mxu0 0.0
    %955 = vmatpush1.msra.mxu0 0.0
    %956 = vmatprep.subr.mxu0 0.0
    %957 = vmatpush1.msra.mxu0 0.0
    %958 = vmatprep.subr.mxu0 0.0
    %959 = vmatpush1.msra.mxu0 0.0
    %960 = vmatprep.subr.mxu0 0.0
    %961 = vmatpush1.msra.mxu0 0.0
    %962 = vmatprep.subr.mxu0 0.0
    %963 = vmatpush1.msra.mxu0 0.0
    %964 = vmatprep.subr.mxu0 0.0
    %965 = vmatpush1.msra.mxu0 0.0
    %966 = vmatprep.subr.mxu0 0.0
    %967 = vmatpush1.msra.mxu0 0.0
    %968 = vmatprep.subr.mxu0 0.0
    %969 = vmatpush1.msra.mxu0 0.0
    %970 = vmatprep.subr.mxu0 0.0
    %971 = vmatpush1.msra.mxu0 0.0
    %972 = vmatprep.subr.mxu0 0.0
    %973 = vmatpush1.msra.mxu0 0.0
    %974 = vmatprep.subr.mxu0 0.0
    %975 = vmatpush1.msra.mxu0 0.0
    %976 = vmatprep.subr.mxu0 0.0
    %977 = vmatpush1.msra.mxu0 0.0
    %978 = vmatprep.subr.mxu0 0.0
    %979 = vmatpush1.msra.mxu0 0.0
    %980 = vmatprep.subr.mxu0 0.0
    %981 = vmatpush1.msra.mxu0 0.0
    %982 = vmatprep.subr.mxu0 0.0
    %983 = vmatpush1.msra.mxu0 0.0
    %984 = vmatprep.mubr.f32.mxu0 0.0
    %985 = vmatmul.mubr.f32.gmra.mrb[0].mxu0 %v918
    %v986 = vpop.f32.mrb[0].mxu0
    %v987 = vadd.f32 0.0, %v986
    %v988 = vpop.f32.mrb[0].mxu0
    %989 = vdwg.mxu0
    %v991 = vrot.slane %v916, 6
    %v992 = vsel %vm173, %v991, 0
    %994 = vmatprep.subr.mxu0 0.0
    %995 = vmatpush1.msra.mxu0 %v37
    %996 = vmatprep.subr.mxu0 0.0
    %997 = vmatpush1.msra.mxu0 %v38
    %998 = vmatprep.subr.mxu0 0.0
    %999 = vmatpush1.msra.mxu0 %v39
    %1000 = vmatprep.subr.mxu0 0.0
    %1001 = vmatpush1.msra.mxu0 %v40
    %1002 = vmatprep.subr.mxu0 0.0
    %1003 = vmatpush1.msra.mxu0 0.0
    %1004 = vmatprep.subr.mxu0 0.0
    %1005 = vmatpush1.msra.mxu0 0.0
    %1006 = vmatprep.subr.mxu0 0.0
    %1007 = vmatpush1.msra.mxu0 0.0
    %1008 = vmatprep.subr.mxu0 0.0
    %1009 = vmatpush1.msra.mxu0 0.0
    %1010 = vmatprep.subr.mxu0 0.0
    %1011 = vmatpush1.msra.mxu0 0.0
    %1012 = vmatprep.subr.mxu0 0.0
    %1013 = vmatpush1.msra.mxu0 0.0
    %1014 = vmatprep.subr.mxu0 0.0
    %1015 = vmatpush1.msra.mxu0 0.0
    %1016 = vmatprep.subr.mxu0 0.0
    %1017 = vmatpush1.msra.mxu0 0.0
    %1018 = vmatprep.subr.mxu0 0.0
    %1019 = vmatpush1.msra.mxu0 0.0
    %1020 = vmatprep.subr.mxu0 0.0
    %1021 = vmatpush1.msra.mxu0 0.0
    %1022 = vmatprep.subr.mxu0 0.0
    %1023 = vmatpush1.msra.mxu0 0.0
    %1024 = vmatprep.subr.mxu0 0.0
    %1025 = vmatpush1.msra.mxu0 0.0
    %1026 = vmatprep.subr.mxu0 0.0
    %1027 = vmatpush1.msra.mxu0 0.0
    %1028 = vmatprep.subr.mxu0 0.0
    %1029 = vmatpush1.msra.mxu0 0.0
    %1030 = vmatprep.subr.mxu0 0.0
    %1031 = vmatpush1.msra.mxu0 0.0
    %1032 = vmatprep.subr.mxu0 0.0
    %1033 = vmatpush1.msra.mxu0 0.0
    %1034 = vmatprep.subr.mxu0 0.0
    %1035 = vmatpush1.msra.mxu0 0.0
    %1036 = vmatprep.subr.mxu0 0.0
    %1037 = vmatpush1.msra.mxu0 0.0
    %1038 = vmatprep.subr.mxu0 0.0
    %1039 = vmatpush1.msra.mxu0 0.0
    %1040 = vmatprep.subr.mxu0 0.0
    %1041 = vmatpush1.msra.mxu0 0.0
    %1042 = vmatprep.subr.mxu0 0.0
    %1043 = vmatpush1.msra.mxu0 0.0
    %1044 = vmatprep.subr.mxu0 0.0
    %1045 = vmatpush1.msra.mxu0 0.0
    %1046 = vmatprep.subr.mxu0 0.0
    %1047 = vmatpush1.msra.mxu0 0.0
    %1048 = vmatprep.subr.mxu0 0.0
    %1049 = vmatpush1.msra.mxu0 0.0
    %1050 = vmatprep.subr.mxu0 0.0
    %1051 = vmatpush1.msra.mxu0 0.0
    %1052 = vmatprep.subr.mxu0 0.0
    %1053 = vmatpush1.msra.mxu0 0.0
    %1054 = vmatprep.subr.mxu0 0.0
    %1055 = vmatpush1.msra.mxu0 0.0
    %1056 = vmatprep.subr.mxu0 0.0
    %1057 = vmatpush1.msra.mxu0 0.0
    %1058 = vmatprep.mubr.f32.mxu0 0.0
    %1059 = vmatmul.mubr.f32.gmra.mrb[0].mxu0 %v992
    %v1060 = vpop.f32.mrb[0].mxu0
    %v1061 = vadd.f32 %v987, %v1060
    %v1062 = vpop.f32.mrb[0].mxu0
    %1063 = vdwg.mxu0
    %v1064 = vadd.f32 %v1061, %v50
    %v1065 = vtanh.pop %v1064
    %1066 = vmatprep.subr.mxu0 0.0
    %1067 = vmatpush1.msra.mxu0 %v33
    %1068 = vmatprep.subr.mxu0 0.0
    %1069 = vmatpush1.msra.mxu0 %v34
    %1070 = vmatprep.subr.mxu0 0.0
    %1071 = vmatpush1.msra.mxu0 %v35
    %1072 = vmatprep.subr.mxu0 0.0
    %1073 = vmatpush1.msra.mxu0 %v36
    %1074 = vmatprep.subr.mxu0 0.0
    %1075 = vmatpush1.msra.mxu0 0.0
    %1076 = vmatprep.subr.mxu0 0.0
    %1077 = vmatpush1.msra.mxu0 0.0
    %1078 = vmatprep.subr.mxu0 0.0
    %1079 = vmatpush1.msra.mxu0 0.0
    %1080 = vmatprep.subr.mxu0 0.0
    %1081 = vmatpush1.msra.mxu0 0.0
    %1082 = vmatprep.subr.mxu0 0.0
    %1083 = vmatpush1.msra.mxu0 0.0
    %1084 = vmatprep.subr.mxu0 0.0
    %1085 = vmatpush1.msra.mxu0 0.0
    %1086 = vmatprep.subr.mxu0 0.0
    %1087 = vmatpush1.msra.mxu0 0.0
    %1088 = vmatprep.subr.mxu0 0.0
    %1089 = vmatpush1.msra.mxu0 0.0
    %1090 = vmatprep.subr.mxu0 0.0
    %1091 = vmatpush1.msra.mxu0 0.0
    %1092 = vmatprep.subr.mxu0 0.0
    %1093 = vmatpush1.msra.mxu0 0.0
    %1094 = vmatprep.subr.mxu0 0.0
    %1095 = vmatpush1.msra.mxu0 0.0
    %1096 = vmatprep.subr.mxu0 0.0
    %1097 = vmatpush1.msra.mxu0 0.0
    %1098 = vmatprep.subr.mxu0 0.0
    %1099 = vmatpush1.msra.mxu0 0.0
    %1100 = vmatprep.subr.mxu0 0.0
    %1101 = vmatpush1.msra.mxu0 0.0
    %1102 = vmatprep.subr.mxu0 0.0
    %1103 = vmatpush1.msra.mxu0 0.0
    %1104 = vmatprep.subr.mxu0 0.0
    %1105 = vmatpush1.msra.mxu0 0.0
    %1106 = vmatprep.subr.mxu0 0.0
    %1107 = vmatpush1.msra.mxu0 0.0
    %1108 = vmatprep.subr.mxu0 0.0
    %1109 = vmatpush1.msra.mxu0 0.0
    %1110 = vmatprep.subr.mxu0 0.0
    %1111 = vmatpush1.msra.mxu0 0.0
    %1112 = vmatprep.subr.mxu0 0.0
    %1113 = vmatpush1.msra.mxu0 0.0
    %1114 = vmatprep.subr.mxu0 0.0
    %1115 = vmatpush1.msra.mxu0 0.0
    %1116 = vmatprep.subr.mxu0 0.0
    %1117 = vmatpush1.msra.mxu0 0.0
    %1118 = vmatprep.subr.mxu0 0.0
    %1119 = vmatpush1.msra.mxu0 0.0
    %1120 = vmatprep.subr.mxu0 0.0
    %1121 = vmatpush1.msra.mxu0 0.0
    %1122 = vmatprep.subr.mxu0 0.0
    %1123 = vmatpush1.msra.mxu0 0.0
    %1124 = vmatprep.subr.mxu0 0.0
    %1125 = vmatpush1.msra.mxu0 0.0
    %1126 = vmatprep.subr.mxu0 0.0
    %1127 = vmatpush1.msra.mxu0 0.0
    %1128 = vmatprep.subr.mxu0 0.0
    %1129 = vmatpush1.msra.mxu0 0.0
    %1130 = vmatprep.mubr.f32.mxu0 0.0
    %1131 = vmatmul.mubr.f32.gmra.mrb[0].mxu0 %v992
    %v1132 = vpop.f32.mrb[0].mxu0
    %v1133 = vadd.f32 0.0, %v1132
    %v1134 = vpop.f32.mrb[0].mxu0
    %1135 = vdwg.mxu0
    %v1136 = vadd.f32 %v170, %v1133
    %v1137 = vtanh.pop %v1136
    %v1139 = vsel %vm173, %v1065, 0
    %1141 = vmatprep.subr.mxu0 0.0
    %1142 = vmatpush1.msra.mxu0 %v41
    %1143 = vmatprep.subr.mxu0 0.0
    %1144 = vmatpush1.msra.mxu0 %v42
    %1145 = vmatprep.subr.mxu0 0.0
    %1146 = vmatpush1.msra.mxu0 %v43
    %1147 = vmatprep.subr.mxu0 0.0
    %1148 = vmatpush1.msra.mxu0 %v44
    %1149 = vmatprep.subr.mxu0 0.0
    %1150 = vmatpush1.msra.mxu0 0.0
    %1151 = vmatprep.subr.mxu0 0.0
    %1152 = vmatpush1.msra.mxu0 0.0
    %1153 = vmatprep.subr.mxu0 0.0
    %1154 = vmatpush1.msra.mxu0 0.0
    %1155 = vmatprep.subr.mxu0 0.0
    %1156 = vmatpush1.msra.mxu0 0.0
    %1157 = vmatprep.subr.mxu0 0.0
    %1158 = vmatpush1.msra.mxu0 0.0
    %1159 = vmatprep.subr.mxu0 0.0
    %1160 = vmatpush1.msra.mxu0 0.0
    %1161 = vmatprep.subr.mxu0 0.0
    %1162 = vmatpush1.msra.mxu0 0.0
    %1163 = vmatprep.subr.mxu0 0.0
    %1164 = vmatpush1.msra.mxu0 0.0
    %1165 = vmatprep.subr.mxu0 0.0
    %1166 = vmatpush1.msra.mxu0 0.0
    %1167 = vmatprep.subr.mxu0 0.0
    %1168 = vmatpush1.msra.mxu0 0.0
    %1169 = vmatprep.subr.mxu0 0.0
    %1170 = vmatpush1.msra.mxu0 0.0
    %1171 = vmatprep.subr.mxu0 0.0
    %1172 = vmatpush1.msra.mxu0 0.0
    %1173 = vmatprep.subr.mxu0 0.0
    %1174 = vmatpush1.msra.mxu0 0.0
    %1175 = vmatprep.subr.mxu0 0.0
    %1176 = vmatpush1.msra.mxu0 0.0
    %1177 = vmatprep.subr.mxu0 0.0
    %1178 = vmatpush1.msra.mxu0 0.0
    %1179 = vmatprep.subr.mxu0 0.0
    %1180 = vmatpush1.msra.mxu0 0.0
    %1181 = vmatprep.subr.mxu0 0.0
    %1182 = vmatpush1.msra.mxu0 0.0
    %1183 = vmatprep.subr.mxu0 0.0
    %1184 = vmatpush1.msra.mxu0 0.0
    %1185 = vmatprep.subr.mxu0 0.0
    %1186 = vmatpush1.msra.mxu0 0.0
    %1187 = vmatprep.subr.mxu0 0.0
    %1188 = vmatpush1.msra.mxu0 0.0
    %1189 = vmatprep.subr.mxu0 0.0
    %1190 = vmatpush1.msra.mxu0 0.0
    %1191 = vmatprep.subr.mxu0 0.0
    %1192 = vmatpush1.msra.mxu0 0.0
    %1193 = vmatprep.subr.mxu0 0.0
    %1194 = vmatpush1.msra.mxu0 0.0
    %1195 = vmatprep.subr.mxu0 0.0
    %1196 = vmatpush1.msra.mxu0 0.0
    %1197 = vmatprep.subr.mxu0 0.0
    %1198 = vmatpush1.msra.mxu0 0.0
    %1199 = vmatprep.subr.mxu0 0.0
    %1200 = vmatpush1.msra.mxu0 0.0
    %1201 = vmatprep.subr.mxu0 0.0
    %1202 = vmatpush1.msra.mxu0 0.0
    %1203 = vmatprep.subr.mxu0 0.0
    %1204 = vmatpush1.msra.mxu0 0.0
    %1205 = vmatprep.mubr.f32.mxu0 0.0
    %1206 = vmatmul.mubr.f32.gmra.mrb[0].mxu0 %v1139
    %v1207 = vpop.f32.mrb[0].mxu0
    %v1208 = vadd.f32 0.0, %v1207
    %v1209 = vpop.f32.mrb[0].mxu0
    %1210 = vdwg.mxu0
    %v1212 = vsel %vm173, %v1137, 0
    %1214 = vmatprep.subr.mxu0 0.0
    %1215 = vmatpush1.msra.mxu0 %v37
    %1216 = vmatprep.subr.mxu0 0.0
    %1217 = vmatpush1.msra.mxu0 %v38
    %1218 = vmatprep.subr.mxu0 0.0
    %1219 = vmatpush1.msra.mxu0 %v39
    %1220 = vmatprep.subr.mxu0 0.0
    %1221 = vmatpush1.msra.mxu0 %v40
    %1222 = vmatprep.subr.mxu0 0.0
    %1223 = vmatpush1.msra.mxu0 0.0
    %1224 = vmatprep.subr.mxu0 0.0
    %1225 = vmatpush1.msra.mxu0 0.0
    %1226 = vmatprep.subr.mxu0 0.0
    %1227 = vmatpush1.msra.mxu0 0.0
    %1228 = vmatprep.subr.mxu0 0.0
    %1229 = vmatpush1.msra.mxu0 0.0
    %1230 = vmatprep.subr.mxu0 0.0
    %1231 = vmatpush1.msra.mxu0 0.0
    %1232 = vmatprep.subr.mxu0 0.0
    %1233 = vmatpush1.msra.mxu0 0.0
    %1234 = vmatprep.subr.mxu0 0.0
    %1235 = vmatpush1.msra.mxu0 0.0
    %1236 = vmatprep.subr.mxu0 0.0
    %1237 = vmatpush1.msra.mxu0 0.0
    %1238 = vmatprep.subr.mxu0 0.0
    %1239 = vmatpush1.msra.mxu0 0.0
    %1240 = vmatprep.subr.mxu0 0.0
    %1241 = vmatpush1.msra.mxu0 0.0
    %1242 = vmatprep.subr.mxu0 0.0
    %1243 = vmatpush1.msra.mxu0 0.0
    %1244 = vmatprep.subr.mxu0 0.0
    %1245 = vmatpush1.msra.mxu0 0.0
    %1246 = vmatprep.subr.mxu0 0.0
    %1247 = vmatpush1.msra.mxu0 0.0
    %1248 = vmatprep.subr.mxu0 0.0
    %1249 = vmatpush1.msra.mxu0 0.0
    %1250 = vmatprep.subr.mxu0 0.0
    %1251 = vmatpush1.msra.mxu0 0.0
    %1252 = vmatprep.subr.mxu0 0.0
    %1253 = vmatpush1.msra.mxu0 0.0
    %1254 = vmatprep.subr.mxu0 0.0
    %1255 = vmatpush1.msra.mxu0 0.0
    %1256 = vmatprep.subr.mxu0 0.0
    %1257 = vmatpush1.msra.mxu0 0.0
    %1258 = vmatprep.subr.mxu0 0.0
    %1259 = vmatpush1.msra.mxu0 0.0
    %1260 = vmatprep.subr.mxu0 0.0
    %1261 = vmatpush1.msra.mxu0 0.0
    %1262 = vmatprep.subr.mxu0 0.0
    %1263 = vmatpush1.msra.mxu0 0.0
    %1264 = vmatprep.subr.mxu0 0.0
    %1265 = vmatpush1.msra.mxu0 0.0
    %1266 = vmatprep.subr.mxu0 0.0
    %1267 = vmatpush1.msra.mxu0 0.0
    %1268 = vmatprep.subr.mxu0 0.0
    %1269 = vmatpush1.msra.mxu0 0.0
    %1270 = vmatprep.subr.mxu0 0.0
    %1271 = vmatpush1.msra.mxu0 0.0
    %1272 = vmatprep.subr.mxu0 0.0
    %1273 = vmatpush1.msra.mxu0 0.0
    %1274 = vmatprep.subr.mxu0 0.0
    %1275 = vmatpush1.msra.mxu0 0.0
    %1276 = vmatprep.subr.mxu0 0.0
    %1277 = vmatpush1.msra.mxu0 0.0
    %1278 = vmatprep.mubr.f32.mxu0 0.0
    %1279 = vmatmul.mubr.f32.gmra.mrb[0].mxu0 %v1212
    %v1280 = vpop.f32.mrb[0].mxu0
    %v1281 = vadd.f32 %v1208, %v1280
    %v1282 = vpop.f32.mrb[0].mxu0
    %1283 = vdwg.mxu0
    %v1284 = vadd.f32 %v1281, %v50
    %v1285 = vtanh.pop %v1284
    %1286 = vmatprep.subr.mxu0 0.0
    %1287 = vmatpush1.msra.mxu0 %v33
    %1288 = vmatprep.subr.mxu0 0.0
    %1289 = vmatpush1.msra.mxu0 %v34
    %1290 = vmatprep.subr.mxu0 0.0
    %1291 = vmatpush1.msra.mxu0 %v35
    %1292 = vmatprep.subr.mxu0 0.0
    %1293 = vmatpush1.msra.mxu0 %v36
    %1294 = vmatprep.subr.mxu0 0.0
    %1295 = vmatpush1.msra.mxu0 0.0
    %1296 = vmatprep.subr.mxu0 0.0
    %1297 = vmatpush1.msra.mxu0 0.0
    %1298 = vmatprep.subr.mxu0 0.0
    %1299 = vmatpush1.msra.mxu0 0.0
    %1300 = vmatprep.subr.mxu0 0.0
    %1301 = vmatpush1.msra.mxu0 0.0
    %1302 = vmatprep.subr.mxu0 0.0
    %1303 = vmatpush1.msra.mxu0 0.0
    %1304 = vmatprep.subr.mxu0 0.0
    %1305 = vmatpush1.msra.mxu0 0.0
    %1306 = vmatprep.subr.mxu0 0.0
    %1307 = vmatpush1.msra.mxu0 0.0
    %1308 = vmatprep.subr.mxu0 0.0
    %1309 = vmatpush1.msra.mxu0 0.0
    %1310 = vmatprep.subr.mxu0 0.0
    %1311 = vmatpush1.msra.mxu0 0.0
    %1312 = vmatprep.subr.mxu0 0.0
    %1313 = vmatpush1.msra.mxu0 0.0
    %1314 = vmatprep.subr.mxu0 0.0
    %1315 = vmatpush1.msra.mxu0 0.0
    %1316 = vmatprep.subr.mxu0 0.0
    %1317 = vmatpush1.msra.mxu0 0.0
    %1318 = vmatprep.subr.mxu0 0.0
    %1319 = vmatpush1.msra.mxu0 0.0
    %1320 = vmatprep.subr.mxu0 0.0
    %1321 = vmatpush1.msra.mxu0 0.0
    %1322 = vmatprep.subr.mxu0 0.0
    %1323 = vmatpush1.msra.mxu0 0.0
    %1324 = vmatprep.subr.mxu0 0.0
    %1325 = vmatpush1.msra.mxu0 0.0
    %1326 = vmatprep.subr.mxu0 0.0
    %1327 = vmatpush1.msra.mxu0 0.0
    %1328 = vmatprep.subr.mxu0 0.0
    %1329 = vmatpush1.msra.mxu0 0.0
    %1330 = vmatprep.subr.mxu0 0.0
    %1331 = vmatpush1.msra.mxu0 0.0
    %1332 = vmatprep.subr.mxu0 0.0
    %1333 = vmatpush1.msra.mxu0 0.0
    %1334 = vmatprep.subr.mxu0 0.0
    %1335 = vmatpush1.msra.mxu0 0.0
    %1336 = vmatprep.subr.mxu0 0.0
    %1337 = vmatpush1.msra.mxu0 0.0
    %1338 = vmatprep.subr.mxu0 0.0
    %1339 = vmatpush1.msra.mxu0 0.0
    %1340 = vmatprep.subr.mxu0 0.0
    %1341 = vmatpush1.msra.mxu0 0.0
    %1342 = vmatprep.subr.mxu0 0.0
    %1343 = vmatpush1.msra.mxu0 0.0
    %1344 = vmatprep.subr.mxu0 0.0
    %1345 = vmatpush1.msra.mxu0 0.0
    %1346 = vmatprep.subr.mxu0 0.0
    %1347 = vmatpush1.msra.mxu0 0.0
    %1348 = vmatprep.subr.mxu0 0.0
    %1349 = vmatpush1.msra.mxu0 0.0
    %1350 = vmatprep.mubr.f32.mxu0 0.0
    %1351 = vmatmul.mubr.f32.gmra.mrb[0].mxu0 %v1212
    %v1352 = vpop.f32.mrb[0].mxu0
    %v1353 = vadd.f32 0.0, %v1352
    %v1354 = vpop.f32.mrb[0].mxu0
    %1355 = vdwg.mxu0
    %v1357 = vrot.slane %v1353, 6
    %v1359 = vadd.f32 %v170, %v1357
    %v1360 = vtanh.pop %v1359
    %v1362 = vsel %vm173, %v1285, 0
    %1364 = vmatprep.subr.mxu0 0.0
    %1365 = vmatpush1.msra.mxu0 %v41
    %1366 = vmatprep.subr.mxu0 0.0
    %1367 = vmatpush1.msra.mxu0 %v42
    %1368 = vmatprep.subr.mxu0 0.0
    %1369 = vmatpush1.msra.mxu0 %v43
    %1370 = vmatprep.subr.mxu0 0.0
    %1371 = vmatpush1.msra.mxu0 %v44
    %1372 = vmatprep.subr.mxu0 0.0
    %1373 = vmatpush1.msra.mxu0 0.0
    %1374 = vmatprep.subr.mxu0 0.0
    %1375 = vmatpush1.msra.mxu0 0.0
    %1376 = vmatprep.subr.mxu0 0.0
    %1377 = vmatpush1.msra.mxu0 0.0
    %1378 = vmatprep.subr.mxu0 0.0
    %1379 = vmatpush1.msra.mxu0 0.0
    %1380 = vmatprep.subr.mxu0 0.0
    %1381 = vmatpush1.msra.mxu0 0.0
    %1382 = vmatprep.subr.mxu0 0.0
    %1383 = vmatpush1.msra.mxu0 0.0
    %1384 = vmatprep.subr.mxu0 0.0
    %1385 = vmatpush1.msra.mxu0 0.0
    %1386 = vmatprep.subr.mxu0 0.0
    %1387 = vmatpush1.msra.mxu0 0.0
    %1388 = vmatprep.subr.mxu0 0.0
    %1389 = vmatpush1.msra.mxu0 0.0
    %1390 = vmatprep.subr.mxu0 0.0
    %1391 = vmatpush1.msra.mxu0 0.0
    %1392 = vmatprep.subr.mxu0 0.0
    %1393 = vmatpush1.msra.mxu0 0.0
    %1394 = vmatprep.subr.mxu0 0.0
    %1395 = vmatpush1.msra.mxu0 0.0
    %1396 = vmatprep.subr.mxu0 0.0
    %1397 = vmatpush1.msra.mxu0 0.0
    %1398 = vmatprep.subr.mxu0 0.0
    %1399 = vmatpush1.msra.mxu0 0.0
    %1400 = vmatprep.subr.mxu0 0.0
    %1401 = vmatpush1.msra.mxu0 0.0
    %1402 = vmatprep.subr.mxu0 0.0
    %1403 = vmatpush1.msra.mxu0 0.0
    %1404 = vmatprep.subr.mxu0 0.0
    %1405 = vmatpush1.msra.mxu0 0.0
    %1406 = vmatprep.subr.mxu0 0.0
    %1407 = vmatpush1.msra.mxu0 0.0
    %1408 = vmatprep.subr.mxu0 0.0
    %1409 = vmatpush1.msra.mxu0 0.0
    %1410 = vmatprep.subr.mxu0 0.0
    %1411 = vmatpush1.msra.mxu0 0.0
    %1412 = vmatprep.subr.mxu0 0.0
    %1413 = vmatpush1.msra.mxu0 0.0
    %1414 = vmatprep.subr.mxu0 0.0
    %1415 = vmatpush1.msra.mxu0 0.0
    %1416 = vmatprep.subr.mxu0 0.0
    %1417 = vmatpush1.msra.mxu0 0.0
    %1418 = vmatprep.subr.mxu0 0.0
    %1419 = vmatpush1.msra.mxu0 0.0
    %1420 = vmatprep.subr.mxu0 0.0
    %1421 = vmatpush1.msra.mxu0 0.0
    %1422 = vmatprep.subr.mxu0 0.0
    %1423 = vmatpush1.msra.mxu0 0.0
    %1424 = vmatprep.subr.mxu0 0.0
    %1425 = vmatpush1.msra.mxu0 0.0
    %1426 = vmatprep.subr.mxu0 0.0
    %1427 = vmatpush1.msra.mxu0 0.0
    %1428 = vmatprep.mubr.f32.mxu0 0.0
    %1429 = vmatmul.mubr.f32.gmra.mrb[0].mxu0 %v1362
    %v1430 = vpop.f32.mrb[0].mxu0
    %v1431 = vadd.f32 0.0, %v1430
    %v1432 = vpop.f32.mrb[0].mxu0
    %1433 = vdwg.mxu0
    %v1435 = vrot.slane %v1360, 2
    %v1436 = vsel %vm173, %v1435, 0
    %1438 = vmatprep.subr.mxu0 0.0
    %1439 = vmatpush1.msra.mxu0 %v37
    %1440 = vmatprep.subr.mxu0 0.0
    %1441 = vmatpush1.msra.mxu0 %v38
    %1442 = vmatprep.subr.mxu0 0.0
    %1443 = vmatpush1.msra.mxu0 %v39
    %1444 = vmatprep.subr.mxu0 0.0
    %1445 = vmatpush1.msra.mxu0 %v40
    %1446 = vmatprep.subr.mxu0 0.0
    %1447 = vmatpush1.msra.mxu0 0.0
    %1448 = vmatprep.subr.mxu0 0.0
    %1449 = vmatpush1.msra.mxu0 0.0
    %1450 = vmatprep.subr.mxu0 0.0
    %1451 = vmatpush1.msra.mxu0 0.0
    %1452 = vmatprep.subr.mxu0 0.0
    %1453 = vmatpush1.msra.mxu0 0.0
    %1454 = vmatprep.subr.mxu0 0.0
    %1455 = vmatpush1.msra.mxu0 0.0
    %1456 = vmatprep.subr.mxu0 0.0
    %1457 = vmatpush1.msra.mxu0 0.0
    %1458 = vmatprep.subr.mxu0 0.0
    %1459 = vmatpush1.msra.mxu0 0.0
    %1460 = vmatprep.subr.mxu0 0.0
    %1461 = vmatpush1.msra.mxu0 0.0
    %1462 = vmatprep.subr.mxu0 0.0
    %1463 = vmatpush1.msra.mxu0 0.0
    %1464 = vmatprep.subr.mxu0 0.0
    %1465 = vmatpush1.msra.mxu0 0.0
    %1466 = vmatprep.subr.mxu0 0.0
    %1467 = vmatpush1.msra.mxu0 0.0
    %1468 = vmatprep.subr.mxu0 0.0
    %1469 = vmatpush1.msra.mxu0 0.0
    %1470 = vmatprep.subr.mxu0 0.0
    %1471 = vmatpush1.msra.mxu0 0.0
    %1472 = vmatprep.subr.mxu0 0.0
    %1473 = vmatpush1.msra.mxu0 0.0
    %1474 = vmatprep.subr.mxu0 0.0
    %1475 = vmatpush1.msra.mxu0 0.0
    %1476 = vmatprep.subr.mxu0 0.0
    %1477 = vmatpush1.msra.mxu0 0.0
    %1478 = vmatprep.subr.mxu0 0.0
    %1479 = vmatpush1.msra.mxu0 0.0
    %1480 = vmatprep.subr.mxu0 0.0
    %1481 = vmatpush1.msra.mxu0 0.0
    %1482 = vmatprep.subr.mxu0 0.0
    %1483 = vmatpush1.msra.mxu0 0.0
    %1484 = vmatprep.subr.mxu0 0.0
    %1485 = vmatpush1.msra.mxu0 0.0
    %1486 = vmatprep.subr.mxu0 0.0
    %1487 = vmatpush1.msra.mxu0 0.0
    %1488 = vmatprep.subr.mxu0 0.0
    %1489 = vmatpush1.msra.mxu0 0.0
    %1490 = vmatprep.subr.mxu0 0.0
    %1491 = vmatpush1.msra.mxu0 0.0
    %1492 = vmatprep.subr.mxu0 0.0
    %1493 = vmatpush1.msra.mxu0 0.0
    %1494 = vmatprep.subr.mxu0 0.0
    %1495 = vmatpush1.msra.mxu0 0.0
    %1496 = vmatprep.subr.mxu0 0.0
    %1497 = vmatpush1.msra.mxu0 0.0
    %1498 = vmatprep.subr.mxu0 0.0
    %1499 = vmatpush1.msra.mxu0 0.0
    %1500 = vmatprep.subr.mxu0 0.0
    %1501 = vmatpush1.msra.mxu0 0.0
    %1502 = vmatprep.mubr.f32.mxu0 0.0
    %1503 = vmatmul.mubr.f32.gmra.mrb[0].mxu0 %v1436
    %v1504 = vpop.f32.mrb[0].mxu0
    %v1505 = vadd.f32 %v1431, %v1504
    %v1506 = vpop.f32.mrb[0].mxu0
    %1507 = vdwg.mxu0
    %v1508 = vadd.f32 %v1505, %v50
    %v1509 = vtanh.pop %v1508
    %1510 = vmatprep.subr.mxu0 0.0
    %1511 = vmatpush1.msra.mxu0 %v33
    %1512 = vmatprep.subr.mxu0 0.0
    %1513 = vmatpush1.msra.mxu0 %v34
    %1514 = vmatprep.subr.mxu0 0.0
    %1515 = vmatpush1.msra.mxu0 %v35
    %1516 = vmatprep.subr.mxu0 0.0
    %1517 = vmatpush1.msra.mxu0 %v36
    %1518 = vmatprep.subr.mxu0 0.0
    %1519 = vmatpush1.msra.mxu0 0.0
    %1520 = vmatprep.subr.mxu0 0.0
    %1521 = vmatpush1.msra.mxu0 0.0
    %1522 = vmatprep.subr.mxu0 0.0
    %1523 = vmatpush1.msra.mxu0 0.0
    %1524 = vmatprep.subr.mxu0 0.0
    %1525 = vmatpush1.msra.mxu0 0.0
    %1526 = vmatprep.subr.mxu0 0.0
    %1527 = vmatpush1.msra.mxu0 0.0
    %1528 = vmatprep.subr.mxu0 0.0
    %1529 = vmatpush1.msra.mxu0 0.0
    %1530 = vmatprep.subr.mxu0 0.0
    %1531 = vmatpush1.msra.mxu0 0.0
    %1532 = vmatprep.subr.mxu0 0.0
    %1533 = vmatpush1.msra.mxu0 0.0
    %1534 = vmatprep.subr.mxu0 0.0
    %1535 = vmatpush1.msra.mxu0 0.0
    %1536 = vmatprep.subr.mxu0 0.0
    %1537 = vmatpush1.msra.mxu0 0.0
    %1538 = vmatprep.subr.mxu0 0.0
    %1539 = vmatpush1.msra.mxu0 0.0
    %1540 = vmatprep.subr.mxu0 0.0
    %1541 = vmatpush1.msra.mxu0 0.0
    %1542 = vmatprep.subr.mxu0 0.0
    %1543 = vmatpush1.msra.mxu0 0.0
    %1544 = vmatprep.subr.mxu0 0.0
    %1545 = vmatpush1.msra.mxu0 0.0
    %1546 = vmatprep.subr.mxu0 0.0
    %1547 = vmatpush1.msra.mxu0 0.0
    %1548 = vmatprep.subr.mxu0 0.0
    %1549 = vmatpush1.msra.mxu0 0.0
    %1550 = vmatprep.subr.mxu0 0.0
    %1551 = vmatpush1.msra.mxu0 0.0
    %1552 = vmatprep.subr.mxu0 0.0
    %1553 = vmatpush1.msra.mxu0 0.0
    %1554 = vmatprep.subr.mxu0 0.0
    %1555 = vmatpush1.msra.mxu0 0.0
    %1556 = vmatprep.subr.mxu0 0.0
    %1557 = vmatpush1.msra.mxu0 0.0
    %1558 = vmatprep.subr.mxu0 0.0
    %1559 = vmatpush1.msra.mxu0 0.0
    %1560 = vmatprep.subr.mxu0 0.0
    %1561 = vmatpush1.msra.mxu0 0.0
    %1562 = vmatprep.subr.mxu0 0.0
    %1563 = vmatpush1.msra.mxu0 0.0
    %1564 = vmatprep.subr.mxu0 0.0
    %1565 = vmatpush1.msra.mxu0 0.0
    %1566 = vmatprep.subr.mxu0 0.0
    %1567 = vmatpush1.msra.mxu0 0.0
    %1568 = vmatprep.subr.mxu0 0.0
    %1569 = vmatpush1.msra.mxu0 0.0
    %1570 = vmatprep.subr.mxu0 0.0
    %1571 = vmatpush1.msra.mxu0 0.0
    %1572 = vmatprep.subr.mxu0 0.0
    %1573 = vmatpush1.msra.mxu0 0.0
    %1574 = vmatprep.mubr.f32.mxu0 0.0
    %1575 = vmatmul.mubr.f32.gmra.mrb[0].mxu0 %v1436
    %v1576 = vpop.f32.mrb[0].mxu0
    %v1577 = vadd.f32 0.0, %v1576
    %v1578 = vpop.f32.mrb[0].mxu0
    %1579 = vdwg.mxu0
    %v1581 = vrot.slane %v1577, 4
    %v1583 = vadd.f32 %v170, %v1581
    %v1584 = vtanh.pop %v1583
    %v1586 = vsel %vm173, %v1509, 0
    %1588 = vmatprep.subr.mxu0 0.0
    %1589 = vmatpush1.msra.mxu0 %v41
    %1590 = vmatprep.subr.mxu0 0.0
    %1591 = vmatpush1.msra.mxu0 %v42
    %1592 = vmatprep.subr.mxu0 0.0
    %1593 = vmatpush1.msra.mxu0 %v43
    %1594 = vmatprep.subr.mxu0 0.0
    %1595 = vmatpush1.msra.mxu0 %v44
    %1596 = vmatprep.subr.mxu0 0.0
    %1597 = vmatpush1.msra.mxu0 0.0
    %1598 = vmatprep.subr.mxu0 0.0
    %1599 = vmatpush1.msra.mxu0 0.0
    %1600 = vmatprep.subr.mxu0 0.0
    %1601 = vmatpush1.msra.mxu0 0.0
    %1602 = vmatprep.subr.mxu0 0.0
    %1603 = vmatpush1.msra.mxu0 0.0
    %1604 = vmatprep.subr.mxu0 0.0
    %1605 = vmatpush1.msra.mxu0 0.0
    %1606 = vmatprep.subr.mxu0 0.0
    %1607 = vmatpush1.msra.mxu0 0.0
    %1608 = vmatprep.subr.mxu0 0.0
    %1609 = vmatpush1.msra.mxu0 0.0
    %1610 = vmatprep.subr.mxu0 0.0
    %1611 = vmatpush1.msra.mxu0 0.0
    %1612 = vmatprep.subr.mxu0 0.0
    %1613 = vmatpush1.msra.mxu0 0.0
    %1614 = vmatprep.subr.mxu0 0.0
    %1615 = vmatpush1.msra.mxu0 0.0
    %1616 = vmatprep.subr.mxu0 0.0
    %1617 = vmatpush1.msra.mxu0 0.0
    %1618 = vmatprep.subr.mxu0 0.0
    %1619 = vmatpush1.msra.mxu0 0.0
    %1620 = vmatprep.subr.mxu0 0.0
    %1621 = vmatpush1.msra.mxu0 0.0
    %1622 = vmatprep.subr.mxu0 0.0
    %1623 = vmatpush1.msra.mxu0 0.0
    %1624 = vmatprep.subr.mxu0 0.0
    %1625 = vmatpush1.msra.mxu0 0.0
    %1626 = vmatprep.subr.mxu0 0.0
    %1627 = vmatpush1.msra.mxu0 0.0
    %1628 = vmatprep.subr.mxu0 0.0
    %1629 = vmatpush1.msra.mxu0 0.0
    %1630 = vmatprep.subr.mxu0 0.0
    %1631 = vmatpush1.msra.mxu0 0.0
    %1632 = vmatprep.subr.mxu0 0.0
    %1633 = vmatpush1.msra.mxu0 0.0
    %1634 = vmatprep.subr.mxu0 0.0
    %1635 = vmatpush1.msra.mxu0 0.0
    %1636 = vmatprep.subr.mxu0 0.0
    %1637 = vmatpush1.msra.mxu0 0.0
    %1638 = vmatprep.subr.mxu0 0.0
    %1639 = vmatpush1.msra.mxu0 0.0
    %1640 = vmatprep.subr.mxu0 0.0
    %1641 = vmatpush1.msra.mxu0 0.0
    %1642 = vmatprep.subr.mxu0 0.0
    %1643 = vmatpush1.msra.mxu0 0.0
    %1644 = vmatprep.subr.mxu0 0.0
    %1645 = vmatpush1.msra.mxu0 0.0
    %1646 = vmatprep.subr.mxu0 0.0
    %1647 = vmatpush1.msra.mxu0 0.0
    %1648 = vmatprep.subr.mxu0 0.0
    %1649 = vmatpush1.msra.mxu0 0.0
    %1650 = vmatprep.subr.mxu0 0.0
    %1651 = vmatpush1.msra.mxu0 0.0
    %1652 = vmatprep.mubr.f32.mxu0 0.0
    %1653 = vmatmul.mubr.f32.gmra.mrb[0].mxu0 %v1586
    %v1654 = vpop.f32.mrb[0].mxu0
    %v1655 = vadd.f32 0.0, %v1654
    %v1656 = vpop.f32.mrb[0].mxu0
    %1657 = vdwg.mxu0
    %v1659 = vrot.slane %v1584, 4
    %v1660 = vsel %vm173, %v1659, 0
    %1662 = vmatprep.subr.mxu0 0.0
    %1663 = vmatpush1.msra.mxu0 %v37
    %1664 = vmatprep.subr.mxu0 0.0
    %1665 = vmatpush1.msra.mxu0 %v38
    %1666 = vmatprep.subr.mxu0 0.0
    %1667 = vmatpush1.msra.mxu0 %v39
    %1668 = vmatprep.subr.mxu0 0.0
    %1669 = vmatpush1.msra.mxu0 %v40
    %1670 = vmatprep.subr.mxu0 0.0
    %1671 = vmatpush1.msra.mxu0 0.0
    %1672 = vmatprep.subr.mxu0 0.0
    %1673 = vmatpush1.msra.mxu0 0.0
    %1674 = vmatprep.subr.mxu0 0.0
    %1675 = vmatpush1.msra.mxu0 0.0
    %1676 = vmatprep.subr.mxu0 0.0
    %1677 = vmatpush1.msra.mxu0 0.0
    %1678 = vmatprep.subr.mxu0 0.0
    %1679 = vmatpush1.msra.mxu0 0.0
    %1680 = vmatprep.subr.mxu0 0.0
    %1681 = vmatpush1.msra.mxu0 0.0
    %1682 = vmatprep.subr.mxu0 0.0
    %1683 = vmatpush1.msra.mxu0 0.0
    %1684 = vmatprep.subr.mxu0 0.0
    %1685 = vmatpush1.msra.mxu0 0.0
    %1686 = vmatprep.subr.mxu0 0.0
    %1687 = vmatpush1.msra.mxu0 0.0
    %1688 = vmatprep.subr.mxu0 0.0
    %1689 = vmatpush1.msra.mxu0 0.0
    %1690 = vmatprep.subr.mxu0 0.0
    %1691 = vmatpush1.msra.mxu0 0.0
    %1692 = vmatprep.subr.mxu0 0.0
    %1693 = vmatpush1.msra.mxu0 0.0
    %1694 = vmatprep.subr.mxu0 0.0
    %1695 = vmatpush1.msra.mxu0 0.0
    %1696 = vmatprep.subr.mxu0 0.0
    %1697 = vmatpush1.msra.mxu0 0.0
    %1698 = vmatprep.subr.mxu0 0.0
    %1699 = vmatpush1.msra.mxu0 0.0
    %1700 = vmatprep.subr.mxu0 0.0
    %1701 = vmatpush1.msra.mxu0 0.0
    %1702 = vmatprep.subr.mxu0 0.0
    %1703 = vmatpush1.msra.mxu0 0.0
    %1704 = vmatprep.subr.mxu0 0.0
    %1705 = vmatpush1.msra.mxu0 0.0
    %1706 = vmatprep.subr.mxu0 0.0
    %1707 = vmatpush1.msra.mxu0 0.0
    %1708 = vmatprep.subr.mxu0 0.0
    %1709 = vmatpush1.msra.mxu0 0.0
    %1710 = vmatprep.subr.mxu0 0.0
    %1711 = vmatpush1.msra.mxu0 0.0
    %1712 = vmatprep.subr.mxu0 0.0
    %1713 = vmatpush1.msra.mxu0 0.0
    %1714 = vmatprep.subr.mxu0 0.0
    %1715 = vmatpush1.msra.mxu0 0.0
    %1716 = vmatprep.subr.mxu0 0.0
    %1717 = vmatpush1.msra.mxu0 0.0
    %1718 = vmatprep.subr.mxu0 0.0
    %1719 = vmatpush1.msra.mxu0 0.0
    %1720 = vmatprep.subr.mxu0 0.0
    %1721 = vmatpush1.msra.mxu0 0.0
    %1722 = vmatprep.subr.mxu0 0.0
    %1723 = vmatpush1.msra.mxu0 0.0
    %1724 = vmatprep.subr.mxu0 0.0
    %1725 = vmatpush1.msra.mxu0 0.0
    %1726 = vmatprep.mubr.f32.mxu0 0.0
    %1727 = vmatmul.mubr.f32.gmra.mrb[0].mxu0 %v1660
    %v1728 = vpop.f32.mrb[0].mxu0
    %v1729 = vadd.f32 %v1655, %v1728
    %v1730 = vpop.f32.mrb[0].mxu0
    %1731 = vdwg.mxu0
    %v1732 = vadd.f32 %v1729, %v50
    %v1733 = vtanh.pop %v1732
    %1734 = vmatprep.subr.mxu0 0.0
    %1735 = vmatpush1.msra.mxu0 %v33
    %1736 = vmatprep.subr.mxu0 0.0
    %1737 = vmatpush1.msra.mxu0 %v34
    %1738 = vmatprep.subr.mxu0 0.0
    %1739 = vmatpush1.msra.mxu0 %v35
    %1740 = vmatprep.subr.mxu0 0.0
    %1741 = vmatpush1.msra.mxu0 %v36
    %1742 = vmatprep.subr.mxu0 0.0
    %1743 = vmatpush1.msra.mxu0 0.0
    %1744 = vmatprep.subr.mxu0 0.0
    %1745 = vmatpush1.msra.mxu0 0.0
    %1746 = vmatprep.subr.mxu0 0.0
    %1747 = vmatpush1.msra.mxu0 0.0
    %1748 = vmatprep.subr.mxu0 0.0
    %1749 = vmatpush1.msra.mxu0 0.0
    %1750 = vmatprep.subr.mxu0 0.0
    %1751 = vmatpush1.msra.mxu0 0.0
    %1752 = vmatprep.subr.mxu0 0.0
    %1753 = vmatpush1.msra.mxu0 0.0
    %1754 = vmatprep.subr.mxu0 0.0
    %1755 = vmatpush1.msra.mxu0 0.0
    %1756 = vmatprep.subr.mxu0 0.0
    %1757 = vmatpush1.msra.mxu0 0.0
    %1758 = vmatprep.subr.mxu0 0.0
    %1759 = vmatpush1.msra.mxu0 0.0
    %1760 = vmatprep.subr.mxu0 0.0
    %1761 = vmatpush1.msra.mxu0 0.0
    %1762 = vmatprep.subr.mxu0 0.0
    %1763 = vmatpush1.msra.mxu0 0.0
    %1764 = vmatprep.subr.mxu0 0.0
    %1765 = vmatpush1.msra.mxu0 0.0
    %1766 = vmatprep.subr.mxu0 0.0
    %1767 = vmatpush1.msra.mxu0 0.0
    %1768 = vmatprep.subr.mxu0 0.0
    %1769 = vmatpush1.msra.mxu0 0.0
    %1770 = vmatprep.subr.mxu0 0.0
    %1771 = vmatpush1.msra.mxu0 0.0
    %1772 = vmatprep.subr.mxu0 0.0
    %1773 = vmatpush1.msra.mxu0 0.0
    %1774 = vmatprep.subr.mxu0 0.0
    %1775 = vmatpush1.msra.mxu0 0.0
    %1776 = vmatprep.subr.mxu0 0.0
    %1777 = vmatpush1.msra.mxu0 0.0
    %1778 = vmatprep.subr.mxu0 0.0
    %1779 = vmatpush1.msra.mxu0 0.0
    %1780 = vmatprep.subr.mxu0 0.0
    %1781 = vmatpush1.msra.mxu0 0.0
    %1782 = vmatprep.subr.mxu0 0.0
    %1783 = vmatpush1.msra.mxu0 0.0
    %1784 = vmatprep.subr.mxu0 0.0
    %1785 = vmatpush1.msra.mxu0 0.0
    %1786 = vmatprep.subr.mxu0 0.0
    %1787 = vmatpush1.msra.mxu0 0.0
    %1788 = vmatprep.subr.mxu0 0.0
    %1789 = vmatpush1.msra.mxu0 0.0
    %1790 = vmatprep.subr.mxu0 0.0
    %1791 = vmatpush1.msra.mxu0 0.0
    %1792 = vmatprep.subr.mxu0 0.0
    %1793 = vmatpush1.msra.mxu0 0.0
    %1794 = vmatprep.subr.mxu0 0.0
    %1795 = vmatpush1.msra.mxu0 0.0
    %1796 = vmatprep.subr.mxu0 0.0
    %1797 = vmatpush1.msra.mxu0 0.0
    %1798 = vmatprep.mubr.f32.mxu0 0.0
    %1799 = vmatmul.mubr.f32.gmra.mrb[0].mxu0 %v1660
    %v1800 = vpop.f32.mrb[0].mxu0
    %v1801 = vadd.f32 0.0, %v1800
    %v1802 = vpop.f32.mrb[0].mxu0
    %1803 = vdwg.mxu0
    %v1805 = vrot.slane %v1801, 2
    %v1807 = vadd.f32 %v170, %v1805
    %v1808 = vtanh.pop %v1807
    %v1810 = vsel %vm173, %v1733, 0
    %1812 = vmatprep.subr.mxu0 0.0
    %1813 = vmatpush1.msra.mxu0 %v41
    %1814 = vmatprep.subr.mxu0 0.0
    %1815 = vmatpush1.msra.mxu0 %v42
    %1816 = vmatprep.subr.mxu0 0.0
    %1817 = vmatpush1.msra.mxu0 %v43
    %1818 = vmatprep.subr.mxu0 0.0
    %1819 = vmatpush1.msra.mxu0 %v44
    %1820 = vmatprep.subr.mxu0 0.0
    %1821 = vmatpush1.msra.mxu0 0.0
    %1822 = vmatprep.subr.mxu0 0.0
    %1823 = vmatpush1.msra.mxu0 0.0
    %1824 = vmatprep.subr.mxu0 0.0
    %1825 = vmatpush1.msra.mxu0 0.0
    %1826 = vmatprep.subr.mxu0 0.0
    %1827 = vmatpush1.msra.mxu0 0.0
    %1828 = vmatprep.subr.mxu0 0.0
    %1829 = vmatpush1.msra.mxu0 0.0
    %1830 = vmatprep.subr.mxu0 0.0
    %1831 = vmatpush1.msra.mxu0 0.0
    %1832 = vmatprep.subr.mxu0 0.0
    %1833 = vmatpush1.msra.mxu0 0.0
    %1834 = vmatprep.subr.mxu0 0.0
    %1835 = vmatpush1.msra.mxu0 0.0
    %1836 = vmatprep.subr.mxu0 0.0
    %1837 = vmatpush1.msra.mxu0 0.0
    %1838 = vmatprep.subr.mxu0 0.0
    %1839 = vmatpush1.msra.mxu0 0.0
    %1840 = vmatprep.subr.mxu0 0.0
    %1841 = vmatpush1.msra.mxu0 0.0
    %1842 = vmatprep.subr.mxu0 0.0
    %1843 = vmatpush1.msra.mxu0 0.0
    %1844 = vmatprep.subr.mxu0 0.0
    %1845 = vmatpush1.msra.mxu0 0.0
    %1846 = vmatprep.subr.mxu0 0.0
    %1847 = vmatpush1.msra.mxu0 0.0
    %1848 = vmatprep.subr.mxu0 0.0
    %1849 = vmatpush1.msra.mxu0 0.0
    %1850 = vmatprep.subr.mxu0 0.0
    %1851 = vmatpush1.msra.mxu0 0.0
    %1852 = vmatprep.subr.mxu0 0.0
    %1853 = vmatpush1.msra.mxu0 0.0
    %1854 = vmatprep.subr.mxu0 0.0
    %1855 = vmatpush1.msra.mxu0 0.0
    %1856 = vmatprep.subr.mxu0 0.0
    %1857 = vmatpush1.msra.mxu0 0.0
    %1858 = vmatprep.subr.mxu0 0.0
    %1859 = vmatpush1.msra.mxu0 0.0
    %1860 = vmatprep.subr.mxu0 0.0
    %1861 = vmatpush1.msra.mxu0 0.0
    %1862 = vmatprep.subr.mxu0 0.0
    %1863 = vmatpush1.msra.mxu0 0.0
    %1864 = vmatprep.subr.mxu0 0.0
    %1865 = vmatpush1.msra.mxu0 0.0
    %1866 = vmatprep.subr.mxu0 0.0
    %1867 = vmatpush1.msra.mxu0 0.0
    %1868 = vmatprep.subr.mxu0 0.0
    %1869 = vmatpush1.msra.mxu0 0.0
    %1870 = vmatprep.subr.mxu0 0.0
    %1871 = vmatpush1.msra.mxu0 0.0
    %1872 = vmatprep.subr.mxu0 0.0
    %1873 = vmatpush1.msra.mxu0 0.0
    %1874 = vmatprep.subr.mxu0 0.0
    %1875 = vmatpush1.msra.mxu0 0.0
    %1876 = vmatprep.mubr.f32.mxu0 0.0
    %1877 = vmatmul.mubr.f32.gmra.mrb[0].mxu0 %v1810
    %v1878 = vpop.f32.mrb[0].mxu0
    %v1879 = vadd.f32 0.0, %v1878
    %v1880 = vpop.f32.mrb[0].mxu0
    %1881 = vdwg.mxu0
    %v1883 = vrot.slane %v1808, 6
    %v1884 = vsel %vm173, %v1883, 0
    %1886 = vmatprep.subr.mxu0 0.0
    %1887 = vmatpush1.msra.mxu0 %v37
    %1888 = vmatprep.subr.mxu0 0.0
    %1889 = vmatpush1.msra.mxu0 %v38
    %1890 = vmatprep.subr.mxu0 0.0
    %1891 = vmatpush1.msra.mxu0 %v39
    %1892 = vmatprep.subr.mxu0 0.0
    %1893 = vmatpush1.msra.mxu0 %v40
    %1894 = vmatprep.subr.mxu0 0.0
    %1895 = vmatpush1.msra.mxu0 0.0
    %1896 = vmatprep.subr.mxu0 0.0
    %1897 = vmatpush1.msra.mxu0 0.0
    %1898 = vmatprep.subr.mxu0 0.0
    %1899 = vmatpush1.msra.mxu0 0.0
    %1900 = vmatprep.subr.mxu0 0.0
    %1901 = vmatpush1.msra.mxu0 0.0
    %1902 = vmatprep.subr.mxu0 0.0
    %1903 = vmatpush1.msra.mxu0 0.0
    %1904 = vmatprep.subr.mxu0 0.0
    %1905 = vmatpush1.msra.mxu0 0.0
    %1906 = vmatprep.subr.mxu0 0.0
    %1907 = vmatpush1.msra.mxu0 0.0
    %1908 = vmatprep.subr.mxu0 0.0
    %1909 = vmatpush1.msra.mxu0 0.0
    %1910 = vmatprep.subr.mxu0 0.0
    %1911 = vmatpush1.msra.mxu0 0.0
    %1912 = vmatprep.subr.mxu0 0.0
    %1913 = vmatpush1.msra.mxu0 0.0
    %1914 = vmatprep.subr.mxu0 0.0
    %1915 = vmatpush1.msra.mxu0 0.0
    %1916 = vmatprep.subr.mxu0 0.0
    %1917 = vmatpush1.msra.mxu0 0.0
    %1918 = vmatprep.subr.mxu0 0.0
    %1919 = vmatpush1.msra.mxu0 0.0
    %1920 = vmatprep.subr.mxu0 0.0
    %1921 = vmatpush1.msra.mxu0 0.0
    %1922 = vmatprep.subr.mxu0 0.0
    %1923 = vmatpush1.msra.mxu0 0.0
    %1924 = vmatprep.subr.mxu0 0.0
    %1925 = vmatpush1.msra.mxu0 0.0
    %1926 = vmatprep.subr.mxu0 0.0
    %1927 = vmatpush1.msra.mxu0 0.0
    %1928 = vmatprep.subr.mxu0 0.0
    %1929 = vmatpush1.msra.mxu0 0.0
    %1930 = vmatprep.subr.mxu0 0.0
    %1931 = vmatpush1.msra.mxu0 0.0
    %1932 = vmatprep.subr.mxu0 0.0
    %1933 = vmatpush1.msra.mxu0 0.0
    %1934 = vmatprep.subr.mxu0 0.0
    %1935 = vmatpush1.msra.mxu0 0.0
    %1936 = vmatprep.subr.mxu0 0.0
    %1937 = vmatpush1.msra.mxu0 0.0
    %1938 = vmatprep.subr.mxu0 0.0
    %1939 = vmatpush1.msra.mxu0 0.0
    %1940 = vmatprep.subr.mxu0 0.0
    %1941 = vmatpush1.msra.mxu0 0.0
    %1942 = vmatprep.subr.mxu0 0.0
    %1943 = vmatpush1.msra.mxu0 0.0
    %1944 = vmatprep.subr.mxu0 0.0
    %1945 = vmatpush1.msra.mxu0 0.0
    %1946 = vmatprep.subr.mxu0 0.0
    %1947 = vmatpush1.msra.mxu0 0.0
    %1948 = vmatprep.subr.mxu0 0.0
    %1949 = vmatpush1.msra.mxu0 0.0
    %1950 = vmatprep.mubr.f32.mxu0 0.0
    %1951 = vmatmul.mubr.f32.gmra.mrb[0].mxu0 %v1884
    %v1952 = vpop.f32.mrb[0].mxu0
    %v1953 = vadd.f32 %v1879, %v1952
    %v1954 = vpop.f32.mrb[0].mxu0
    %1955 = vdwg.mxu0
    %v1956 = vadd.f32 %v1953, %v50
    %v1957 = vtanh.pop %v1956
    %v1959 = vlaneseq
    %v1960 = vshrl.u32 %v1959, 7
    %v1961 = vsub.s32 0, %v1960
    %v1962 = vrot.slane %v56, %v1961
    %v1965 = vsel %vm173, %v1957, 0
    %1967 = vmatprep.subr.mxu0 0.0
    %1968 = vmatpush1.msra.mxu0 %v52
    %1969 = vmatprep.subr.mxu0 0.0
    %1970 = vmatpush1.msra.mxu0 %v53
    %1971 = vmatprep.subr.mxu0 0.0
    %1972 = vmatpush1.msra.mxu0 %v54
    %1973 = vmatprep.subr.mxu0 0.0
    %1974 = vmatpush1.msra.mxu0 %v55
    %1975 = vmatprep.subr.mxu0 0.0
    %1976 = vmatpush1.msra.mxu0 0.0
    %1977 = vmatprep.subr.mxu0 0.0
    %1978 = vmatpush1.msra.mxu0 0.0
    %1979 = vmatprep.subr.mxu0 0.0
    %1980 = vmatpush1.msra.mxu0 0.0
    %1981 = vmatprep.subr.mxu0 0.0
    %1982 = vmatpush1.msra.mxu0 0.0
    %1983 = vmatprep.subr.mxu0 0.0
    %1984 = vmatpush1.msra.mxu0 0.0
    %1985 = vmatprep.subr.mxu0 0.0
    %1986 = vmatpush1.msra.mxu0 0.0
    %1987 = vmatprep.subr.mxu0 0.0
    %1988 = vmatpush1.msra.mxu0 0.0
    %1989 = vmatprep.subr.mxu0 0.0
    %1990 = vmatpush1.msra.mxu0 0.0
    %1991 = vmatprep.subr.mxu0 0.0
    %1992 = vmatpush1.msra.mxu0 0.0
    %1993 = vmatprep.subr.mxu0 0.0
    %1994 = vmatpush1.msra.mxu0 0.0
    %1995 = vmatprep.subr.mxu0 0.0
    %1996 = vmatpush1.msra.mxu0 0.0
    %1997 = vmatprep.subr.mxu0 0.0
    %1998 = vmatpush1.msra.mxu0 0.0
    %1999 = vmatprep.subr.mxu0 0.0
    %2000 = vmatpush1.msra.mxu0 0.0
    %2001 = vmatprep.subr.mxu0 0.0
    %2002 = vmatpush1.msra.mxu0 0.0
    %2003 = vmatprep.subr.mxu0 0.0
    %2004 = vmatpush1.msra.mxu0 0.0
    %2005 = vmatprep.subr.mxu0 0.0
    %2006 = vmatpush1.msra.mxu0 0.0
    %2007 = vmatprep.subr.mxu0 0.0
    %2008 = vmatpush1.msra.mxu0 0.0
    %2009 = vmatprep.subr.mxu0 0.0
    %2010 = vmatpush1.msra.mxu0 0.0
    %2011 = vmatprep.subr.mxu0 0.0
    %2012 = vmatpush1.msra.mxu0 0.0
    %2013 = vmatprep.subr.mxu0 0.0
    %2014 = vmatpush1.msra.mxu0 0.0
    %2015 = vmatprep.subr.mxu0 0.0
    %2016 = vmatpush1.msra.mxu0 0.0
    %2017 = vmatprep.subr.mxu0 0.0
    %2018 = vmatpush1.msra.mxu0 0.0
    %2019 = vmatprep.subr.mxu0 0.0
    %2020 = vmatpush1.msra.mxu0 0.0
    %2021 = vmatprep.subr.mxu0 0.0
    %2022 = vmatpush1.msra.mxu0 0.0
    %2023 = vmatprep.subr.mxu0 0.0
    %2024 = vmatpush1.msra.mxu0 0.0
    %2025 = vmatprep.subr.mxu0 0.0
    %2026 = vmatpush1.msra.mxu0 0.0
    %2027 = vmatprep.subr.mxu0 0.0
    %2028 = vmatpush1.msra.mxu0 0.0
    %2029 = vmatprep.subr.mxu0 0.0
    %2030 = vmatpush1.msra.mxu0 0.0
    %2031 = vmatprep.mubr.f32.mxu0 0.0
    %2032 = vmatmul.mubr.f32.gmra.mrb[0].mxu0 %v1965
    %v2033 = vpop.f32.mrb[0].mxu0
    %v2034 = vadd.f32 %v1962, %v2033
    %v2035 = vpop.f32.mrb[0].mxu0
    %2036 = vdwg.mxu0
    %2037 = vst [vmem:[#allocation2] sm:$0x3] %v2034
    // Predicated region
    $region38: #{tpu_custom_call.1} parent=1 // pred_check
      _
    $region39: #{tpu_custom_call.1} parent=1 // pred_check_branch
      %2039 = sbr.rel (0) target = $region41
    $region40: #{tpu_custom_call.1} parent=1 // pred_region
      %s2041 = ssub.s32 32, 32
      %2042 = vsyncadd [#allocation3], %s2041
      %s2044 = sshll.u32 [#allocation2], 4
      %s2045 = int_to_ptr.vmem [resolvable:$true] %s2044
      %2047 = dma.vmem_to_hbm [thread:$0]  %s2045, 32, %s9, [#allocation3]
    $region41: #{tpu_custom_call.1} parent=1 // pred_fallthru
      _
    // Predicated region
    $region42: #{tpu_custom_call.1} parent=1 // pred_check
      _
    $region43: #{tpu_custom_call.1} parent=1 // pred_check_branch
      %2049 = sbr.rel (0) target = $region45
    $region44: #{tpu_custom_call.1} parent=1 // pred_region
      %2050 = dma.done [#allocation3], 32
    $region45: #{tpu_custom_call.1} parent=1 // pred_fallthru
      _
    %2051 = vsyncpa [#allocation3], 1

</llo_original>
